<compile_context>
chip_gen: v5e
topology: v5e:2x2
jax: 0.10.0
libtpu: 0.0.40
codegen_flags: <defaults>
</compile_context>

<pallas_src>
import numpy as np
import jax
import jax.numpy as jnp
from jax.experimental import pallas as pl
from jax.experimental.pallas import tpu as pltpu


def _make_cis_kernel(NB, Cin, H, W, Wp, P, L, starts, compute_dtype):
    """Fused CISConv body: in-kernel zero-pad + im2col slab + one MXU matmul."""
    n_taps = len(starts)

    def kernel(x_ref, w_ref, o_ref, xpad_ref, patches_ref):
        # x_ref      : (NB, Cin, H*W)      raw unpadded images (input dtype)
        # w_ref      : (Cout, n_taps*Cin)  fused + dedup'd tap weights
        # o_ref      : (NB, Cout, L)       L = H*Wp (lane-dense; junk cols cropped outside)
        # xpad_ref   : (Cin, Hp*Wp)        zero-padded image scratch (compute dtype)
        # patches_ref: (n_taps*Cin, NB*L)  im2col slab (compute dtype)

        # Halo zeros.  The interior is fully overwritten per image below, so a
        # single cheap memset per grid step keeps every tap read well defined
        # (also keeps the step self-contained -> megacore safe).
        xpad_ref[...] = jnp.zeros_like(xpad_ref)

        for b in range(NB):
            # In-kernel zero padding: scatter the raw rows (cast to the
            # compute dtype on the fly) into the padded, flattened image.
            img = x_ref[b].astype(compute_dtype)            # (Cin, H*W)
            for h in range(H):
                d0 = (h + P) * Wp + P                       # static python int
                xpad_ref[:, d0:d0 + W] = img[:, h * W:(h + 1) * W]
            # im2col: every tap is one contiguous lane slice of the padded,
            # flattened image.
            for t in range(n_taps):
                s = starts[t]                               # static python int
                patches_ref[t * Cin:(t + 1) * Cin, b * L:(b + 1) * L] = (
                    xpad_ref[:, s:s + L])

        # One MXU matmul covering all taps, all three convolutions and all NB
        # images of this grid step (f32 accumulation).
        acc = jnp.dot(w_ref[...], patches_ref[...],
                      preferred_element_type=jnp.float32)   # (Cout, NB*L)
        for b in range(NB):
            o_ref[b] = acc[:, b * L:(b + 1) * L].astype(o_ref.dtype)

    return kernel


def _grouped_to_dense(w, groups):
    """Expand a grouped-conv weight (O, I/G, kh, kw) to block-diagonal dense
    (O, I, kh, kw)."""
    out_ch, in_pg, kh, kw = w.shape
    in_ch = in_pg * groups
    out_pg = out_ch // groups
    dense = jnp.zeros((out_ch, in_ch, kh, kw), w.dtype)
    for g in range(groups):
        dense = dense.at[g * out_pg:(g + 1) * out_pg,
                         g * in_pg:(g + 1) * in_pg].set(
            w[g * out_pg:(g + 1) * out_pg])
    return dense


def _fused_tap_weights(w_prim, w_shift, w_conv, *, groups, dilation_set,
                       dilation, Cin, P, Wp, compute_dtype):
    """Build the deduplicated fused weight matrix and matching tap offsets."""
    g_total = groups * dilation_set
    wp_d = _grouped_to_dense(w_prim, g_total).astype(jnp.float32)
    wc_d = _grouped_to_dense(w_conv, groups).astype(jnp.float32)
    ws_d = _grouped_to_dense(w_shift, g_total).astype(jnp.float32)

    # Fold the per-group half-channel swap (x_merge) into the prim_shift
    # weights: x_merge = x[:, perm] with perm self-inverse, hence
    # conv(x_merge, Ws) == conv(x, Ws[:, perm]).
    cpg = Cin // groups
    perm = np.concatenate([
        g * cpg + np.concatenate([np.arange(cpg // 2, cpg),
                                  np.arange(0, cpg // 2)])
        for g in range(groups)])
    ws_d = ws_d[:, perm]

    # Tap table keyed by the flattened start offset inside the padded image.
    # Coincident taps of the three convolutions are merged by summing their
    # (Cout, Cin) dense slices in f32 (before the compute-dtype cast):
    #   dilation=3 : 27 -> 25 taps, dilation=1 (CFDF aux) : 27 -> 17 taps.
    tap_w = {}
    order = []
    for wd, pad, dil in ((wp_d, dilation, dilation),           # prim
                         (wc_d, 1, 1),                         # conv
                         (ws_d, 2 * dilation, 2 * dilation)):  # prim_shift (swapped)
        for kh in range(3):
            for kw in range(3):
                oh = (P - pad) + dil * kh
                ow = (P - pad) + dil * kw
                s = oh * Wp + ow
                sl = wd[:, :, kh, kw]
                if s in tap_w:
                    tap_w[s] = tap_w[s] + sl
                else:
                    tap_w[s] = sl
                    order.append(s)
    starts = tuple(int(s) for s in order)
    w_fused = jnp.concatenate([tap_w[s] for s in order], axis=1)
    return starts, w_fused.astype(compute_dtype)


def cis_conv(x, w_prim, w_shift, w_conv, *, groups=1, dilation_set=4,
             dilation=3, compute_dtype=jnp.bfloat16, out_dtype=None,
             vmem_budget_bytes=20 * 2**20):
    """CISConv forward.
    x: (N, Cin, H, W) (NCHW, like PyTorch).
    w_prim/w_shift: (Cout, Cin // (groups*dilation_set), 3, 3)
    w_conv:         (Cout, Cin // groups, 3, 3)
    Returns (N, Cout, H, W) in out_dtype (default: x.dtype)."""
    N, Cin, H, W = x.shape
    Cout = w_conv.shape[0]
    if out_dtype is None:
        out_dtype = x.dtype

    P = 2 * dilation                  # unified halo (= prim_shift padding)
    Wp = W + 2 * P
    Hp = H + 2 * P + 1                # +1 row keeps all flattened tap reads in bounds
    Fp = Hp * Wp
    L = H * Wp                        # per-image output length incl. 2P junk cols/row
    HW = H * W

    starts, w_fused = _fused_tap_weights(
        w_prim, w_shift, w_conv, groups=groups, dilation_set=dilation_set,
        dilation=dilation, Cin=Cin, P=P, Wp=Wp, compute_dtype=compute_dtype)
    n_taps = len(starts)
    K = n_taps * Cin

    # ---- images per grid step + explicit VMEM budget -----------------------
    in_b = np.dtype(x.dtype).itemsize
    out_b = np.dtype(out_dtype).itemsize
    cdt_b = np.dtype(compute_dtype).itemsize

    def footprint(nb):
        return (2 * nb * Cin * HW * in_b      # input block (double-buffered)
                + 2 * Cout * K * cdt_b        # fused weights (double-buffered)
                + 2 * nb * Cout * L * out_b   # output block (double-buffered)
                + Cin * Fp * cdt_b            # padded-image scratch
                + K * nb * L * cdt_b)         # im2col slab

    NB = 1
    for nb in range(1, N + 1):
        if N % nb == 0 and footprint(nb) <= vmem_budget_bytes:
            NB = nb
    vmem_limit = int(min(64 * 2**20, max(24 * 2**20, 2 * footprint(NB))))

    kernel = _make_cis_kernel(NB, Cin, H, W, Wp, P, L, starts, compute_dtype)

    out_flat = pl.pallas_call(
        kernel,
        out_shape=jax.ShapeDtypeStruct((N, Cout, L), out_dtype),
        grid=(N // NB,),
        in_specs=[
            pl.BlockSpec((NB, Cin, HW), lambda s: (s, 0, 0)),
            pl.BlockSpec((Cout, K), lambda s: (0, 0)),
        ],
        out_specs=pl.BlockSpec((NB, Cout, L), lambda s: (s, 0, 0)),
        scratch_shapes=[
            pltpu.VMEM((Cin, Fp), compute_dtype),     # zero-padded image
            pltpu.VMEM((K, NB * L), compute_dtype),   # im2col slab
        ],
        compiler_params=pltpu.CompilerParams(
            dimension_semantics=("parallel",),
            vmem_limit_bytes=vmem_limit),
    )(x.reshape(N, Cin, HW), w_fused)

    # Each length-Wp output row carries W valid columns followed by 2P junk
    # columns (row-wrap contributions land only there); crop them off.
    # TODO(synk): emit bf16 / let the BN+ReLU consumer read the (H, Wp) padded
    #             layout directly to save this writeback + crop round trip.
    return out_flat.reshape(N, Cout, H, Wp)[:, :, :, :W]


def _reference(x, w_prim, w_shift, w_conv, *, groups=1, dilation_set=4,
               dilation=3):
    """Pure-JAX reference replicating the PyTorch CISConv semantics (NCHW)."""
    def conv(lhs, w, padding, dil, g):
        return jax.lax.conv_general_dilated(
            lhs, w, window_strides=(1, 1),
            padding=[(padding, padding), (padding, padding)],
            rhs_dilation=(dil, dil),
            dimension_numbers=("NCHW", "OIHW", "NCHW"),
            feature_group_count=g,
            precision=jax.lax.Precision.HIGHEST,
            preferred_element_type=jnp.float32)

    Cin = x.shape[1]
    cpg = Cin // groups
    parts = []
    for g in range(groups):
        xg = x[:, g * cpg:(g + 1) * cpg]
        x1, x2 = xg[:, :cpg // 2], xg[:, cpg // 2:]
        parts.append(jnp.concatenate([x2, x1], axis=1))
    x_merge = jnp.concatenate(parts, axis=1)

    g_total = groups * dilation_set
    return (conv(x, w_prim, dilation, dilation, g_total)
            + conv(x, w_conv, 1, 1, groups)
            + conv(x_merge, w_shift, 2 * dilation, 2 * dilation, g_total))


if __name__ == "__main__":
    key = jax.random.PRNGKey(0)

    # Test-data conditioning so the bf16 kernel can be compared tightly against
    # the f32 reference:
    #  * x is pre-rounded to bf16-representable values (exact in-kernel cast).
    #  * weights are quantised to multiples of 1/64, so individual weights AND
    #    the up-to-3-way coincident-tap sums created by the dedup step stay
    #    exactly bf16-representable; the only remaining difference vs the f32
    #    reference is f32 accumulation order (~1e-6).
    # Real (unrounded) bf16 deployment needs a looser tolerance (~1e-2).
    bf16_round = lambda a: a.astype(jnp.bfloat16).astype(jnp.float32)
    qweight = lambda a: jnp.round(a * 0.1 * 64.0) / 64.0

    def run_case(k, N, Cin, Cout, H, W, groups, dilation_set, dilation):
        g_total = groups * dilation_set
        k0, k1, k2, k3 = jax.random.split(k, 4)
        x = bf16_round(jax.random.normal(k0, (N, Cin, H, W), jnp.float32))
        w_prim = qweight(jax.random.normal(k1, (Cout, Cin // g_total, 3, 3),
                                           jnp.float32))
        w_shift = qweight(jax.random.normal(k2, (Cout, Cin // g_total, 3, 3),
                                            jnp.float32))
        w_conv = qweight(jax.random.normal(k3, (Cout, Cin // groups, 3, 3),
                                           jnp.float32))

        out = cis_conv(x, w_prim, w_shift, w_conv, groups=groups,
                       dilation_set=dilation_set, dilation=dilation)
        out = jax.block_until_ready(out)
        ref = _reference(x, w_prim, w_shift, w_conv, groups=groups,
                         dilation_set=dilation_set, dilation=dilation)
        np.testing.assert_allclose(np.asarray(out), np.asarray(ref),
                                   rtol=1e-3, atol=1e-3)

    k_a, k_b = jax.random.split(key)
    # (a) CISConv module defaults: dilation=3, groups=1, dilation_set=4
    #     (27 taps dedup to 25).
    run_case(k_a, N=2, Cin=8, Cout=8, H=16, W=16,
             groups=1, dilation_set=4, dilation=3)
    # (b) CFDF-style usage: inter_dim=16 -> CISConv(8, 8, groups=2, dilation=1)
    #     (27 taps dedup to 17).
    run_case(k_b, N=2, Cin=8, Cout=8, H=16, W=16,
             groups=2, dilation_set=4, dilation=1)
    print("KERNEL_OK")
</pallas_src>

<mosaic_0001>
module attributes {stable_mosaic.version = 11 : i64} {
  func.func @kernel(%arg0: i32, %arg1: memref<2x8x256xf32, #tpu.memory_space<vmem>>, %arg2: memref<8x200xbf16, #tpu.memory_space<vmem>>, %arg3: memref<2x8x448xf32, #tpu.memory_space<vmem>>, %arg4: memref<8x812xbf16, #tpu.memory_space<vmem>>, %arg5: memref<200x896xbf16, #tpu.memory_space<vmem>>) attributes {dimension_semantics = [#tpu.dimension_semantics<parallel>], iteration_bounds = array<i64: 1>, scalar_prefetch = 0 : i64, scratch_operands = 2 : i64, tpu.core_type = #tpu.core_type<tc>, window_params = [{transform_indices = @transform_0, window_bounds = array<i64: 2, 8, 256>}, {pipeline_mode = #tpu.pipeline_mode<synchronous>, transform_indices = @transform_1, window_bounds = array<i64: 8, 200>}, {transform_indices = @transform_2, window_bounds = array<i64: 2, 8, 448>}]} {
    %cst = arith.constant 0.000000e+00 : bf16
    %0 = vector.broadcast %cst : bf16 to vector<8x812xbf16>
    %c0 = arith.constant 0 : index
    %c0_0 = arith.constant 0 : index
    %1 = vector.load %arg4[%c0, %c0_0] : memref<8x812xbf16, #tpu.memory_space<vmem>>, vector<8x812xbf16>
    tpu.vector_store %arg4[%c0, %c0_0], %0 {strides = array<i32>} : memref<8x812xbf16, #tpu.memory_space<vmem>>, vector<8x812xbf16>,
    %c0_1 = arith.constant 0 : index
    %c0_2 = arith.constant 0 : index
    %c0_3 = arith.constant 0 : index
    %2 = vector.load %arg1[%c0_1, %c0_2, %c0_3] : memref<2x8x256xf32, #tpu.memory_space<vmem>>, vector<1x8x256xf32>
    %3 = vector.shape_cast %2 : vector<1x8x256xf32> to vector<8x256xf32>
    %4 = arith.truncf %3 : vector<8x256xf32> to vector<8x256xbf16>
    %5 = vector.extract_strided_slice %4 {offsets = [0, 0], sizes = [8, 16], strides = [1, 1]} : vector<8x256xbf16> to vector<8x16xbf16>
    %c0_4 = arith.constant 0 : index
    %c174 = arith.constant 174 : index
    %6 = vector.load %arg4[%c0_4, %c174] : memref<8x812xbf16, #tpu.memory_space<vmem>>, vector<8x16xbf16>
    tpu.vector_store %arg4[%c0_4, %c174], %5 {strides = array<i32>} : memref<8x812xbf16, #tpu.memory_space<vmem>>, vector<8x16xbf16>,
    %7 = vector.extract_strided_slice %4 {offsets = [0, 16], sizes = [8, 16], strides = [1, 1]} : vector<8x256xbf16> to vector<8x16xbf16>
    %c0_5 = arith.constant 0 : index
    %c202 = arith.constant 202 : index
    %8 = vector.load %arg4[%c0_5, %c202] : memref<8x812xbf16, #tpu.memory_space<vmem>>, vector<8x16xbf16>
    tpu.vector_store %arg4[%c0_5, %c202], %7 {strides = array<i32>} : memref<8x812xbf16, #tpu.memory_space<vmem>>, vector<8x16xbf16>,
    %9 = vector.extract_strided_slice %4 {offsets = [0, 32], sizes = [8, 16], strides = [1, 1]} : vector<8x256xbf16> to vector<8x16xbf16>
    %c0_6 = arith.constant 0 : index
    %c230 = arith.constant 230 : index
    %10 = vector.load %arg4[%c0_6, %c230] : memref<8x812xbf16, #tpu.memory_space<vmem>>, vector<8x16xbf16>
    tpu.vector_store %arg4[%c0_6, %c230], %9 {strides = array<i32>} : memref<8x812xbf16, #tpu.memory_space<vmem>>, vector<8x16xbf16>,
    %11 = vector.extract_strided_slice %4 {offsets = [0, 48], sizes = [8, 16], strides = [1, 1]} : vector<8x256xbf16> to vector<8x16xbf16>
    %c0_7 = arith.constant 0 : index
    %c258 = arith.constant 258 : index
    %12 = vector.load %arg4[%c0_7, %c258] : memref<8x812xbf16, #tpu.memory_space<vmem>>, vector<8x16xbf16>
    tpu.vector_store %arg4[%c0_7, %c258], %11 {strides = array<i32>} : memref<8x812xbf16, #tpu.memory_space<vmem>>, vector<8x16xbf16>,
    %13 = vector.extract_strided_slice %4 {offsets = [0, 64], sizes = [8, 16], strides = [1, 1]} : vector<8x256xbf16> to vector<8x16xbf16>
    %c0_8 = arith.constant 0 : index
    %c286 = arith.constant 286 : index
    %14 = vector.load %arg4[%c0_8, %c286] : memref<8x812xbf16, #tpu.memory_space<vmem>>, vector<8x16xbf16>
    tpu.vector_store %arg4[%c0_8, %c286], %13 {strides = array<i32>} : memref<8x812xbf16, #tpu.memory_space<vmem>>, vector<8x16xbf16>,
    %15 = vector.extract_strided_slice %4 {offsets = [0, 80], sizes = [8, 16], strides = [1, 1]} : vector<8x256xbf16> to vector<8x16xbf16>
    %c0_9 = arith.constant 0 : index
    %c314 = arith.constant 314 : index
    %16 = vector.load %arg4[%c0_9, %c314] : memref<8x812xbf16, #tpu.memory_space<vmem>>, vector<8x16xbf16>
    tpu.vector_store %arg4[%c0_9, %c314], %15 {strides = array<i32>} : memref<8x812xbf16, #tpu.memory_space<vmem>>, vector<8x16xbf16>,
    %17 = vector.extract_strided_slice %4 {offsets = [0, 96], sizes = [8, 16], strides = [1, 1]} : vector<8x256xbf16> to vector<8x16xbf16>
    %c0_10 = arith.constant 0 : index
    %c342 = arith.constant 342 : index
    %18 = vector.load %arg4[%c0_10, %c342] : memref<8x812xbf16, #tpu.memory_space<vmem>>, vector<8x16xbf16>
    tpu.vector_store %arg4[%c0_10, %c342], %17 {strides = array<i32>} : memref<8x812xbf16, #tpu.memory_space<vmem>>, vector<8x16xbf16>,
    %19 = vector.extract_strided_slice %4 {offsets = [0, 112], sizes = [8, 16], strides = [1, 1]} : vector<8x256xbf16> to vector<8x16xbf16>
    %c0_11 = arith.constant 0 : index
    %c370 = arith.constant 370 : index
    %20 = vector.load %arg4[%c0_11, %c370] : memref<8x812xbf16, #tpu.memory_space<vmem>>, vector<8x16xbf16>
    tpu.vector_store %arg4[%c0_11, %c370], %19 {strides = array<i32>} : memref<8x812xbf16, #tpu.memory_space<vmem>>, vector<8x16xbf16>,
    %21 = vector.extract_strided_slice %4 {offsets = [0, 128], sizes = [8, 16], strides = [1, 1]} : vector<8x256xbf16> to vector<8x16xbf16>
    %c0_12 = arith.constant 0 : index
    %c398 = arith.constant 398 : index
    %22 = vector.load %arg4[%c0_12, %c398] : memref<8x812xbf16, #tpu.memory_space<vmem>>, vector<8x16xbf16>
    tpu.vector_store %arg4[%c0_12, %c398], %21 {strides = array<i32>} : memref<8x812xbf16, #tpu.memory_space<vmem>>, vector<8x16xbf16>,
    %23 = vector.extract_strided_slice %4 {offsets = [0, 144], sizes = [8, 16], strides = [1, 1]} : vector<8x256xbf16> to vector<8x16xbf16>
    %c0_13 = arith.constant 0 : index
    %c426 = arith.constant 426 : index
    %24 = vector.load %arg4[%c0_13, %c426] : memref<8x812xbf16, #tpu.memory_space<vmem>>, vector<8x16xbf16>
    tpu.vector_store %arg4[%c0_13, %c426], %23 {strides = array<i32>} : memref<8x812xbf16, #tpu.memory_space<vmem>>, vector<8x16xbf16>,
    %25 = vector.extract_strided_slice %4 {offsets = [0, 160], sizes = [8, 16], strides = [1, 1]} : vector<8x256xbf16> to vector<8x16xbf16>
    %c0_14 = arith.constant 0 : index
    %c454 = arith.constant 454 : index
    %26 = vector.load %arg4[%c0_14, %c454] : memref<8x812xbf16, #tpu.memory_space<vmem>>, vector<8x16xbf16>
    tpu.vector_store %arg4[%c0_14, %c454], %25 {strides = array<i32>} : memref<8x812xbf16, #tpu.memory_space<vmem>>, vector<8x16xbf16>,
    %27 = vector.extract_strided_slice %4 {offsets = [0, 176], sizes = [8, 16], strides = [1, 1]} : vector<8x256xbf16> to vector<8x16xbf16>
    %c0_15 = arith.constant 0 : index
    %c482 = arith.constant 482 : index
    %28 = vector.load %arg4[%c0_15, %c482] : memref<8x812xbf16, #tpu.memory_space<vmem>>, vector<8x16xbf16>
    tpu.vector_store %arg4[%c0_15, %c482], %27 {strides = array<i32>} : memref<8x812xbf16, #tpu.memory_space<vmem>>, vector<8x16xbf16>,
    %29 = vector.extract_strided_slice %4 {offsets = [0, 192], sizes = [8, 16], strides = [1, 1]} : vector<8x256xbf16> to vector<8x16xbf16>
    %c0_16 = arith.constant 0 : index
    %c510 = arith.constant 510 : index
    %30 = vector.load %arg4[%c0_16, %c510] : memref<8x812xbf16, #tpu.memory_space<vmem>>, vector<8x16xbf16>
    tpu.vector_store %arg4[%c0_16, %c510], %29 {strides = array<i32>} : memref<8x812xbf16, #tpu.memory_space<vmem>>, vector<8x16xbf16>,
    %31 = vector.extract_strided_slice %4 {offsets = [0, 208], sizes = [8, 16], strides = [1, 1]} : vector<8x256xbf16> to vector<8x16xbf16>
    %c0_17 = arith.constant 0 : index
    %c538 = arith.constant 538 : index
    %32 = vector.load %arg4[%c0_17, %c538] : memref<8x812xbf16, #tpu.memory_space<vmem>>, vector<8x16xbf16>
    tpu.vector_store %arg4[%c0_17, %c538], %31 {strides = array<i32>} : memref<8x812xbf16, #tpu.memory_space<vmem>>, vector<8x16xbf16>,
    %33 = vector.extract_strided_slice %4 {offsets = [0, 224], sizes = [8, 16], strides = [1, 1]} : vector<8x256xbf16> to vector<8x16xbf16>
    %c0_18 = arith.constant 0 : index
    %c566 = arith.constant 566 : index
    %34 = vector.load %arg4[%c0_18, %c566] : memref<8x812xbf16, #tpu.memory_space<vmem>>, vector<8x16xbf16>
    tpu.vector_store %arg4[%c0_18, %c566], %33 {strides = array<i32>} : memref<8x812xbf16, #tpu.memory_space<vmem>>, vector<8x16xbf16>,
    %35 = vector.extract_strided_slice %4 {offsets = [0, 240], sizes = [8, 16], strides = [1, 1]} : vector<8x256xbf16> to vector<8x16xbf16>
    %c0_19 = arith.constant 0 : index
    %c594 = arith.constant 594 : index
    %36 = vector.load %arg4[%c0_19, %c594] : memref<8x812xbf16, #tpu.memory_space<vmem>>, vector<8x16xbf16>
    tpu.vector_store %arg4[%c0_19, %c594], %35 {strides = array<i32>} : memref<8x812xbf16, #tpu.memory_space<vmem>>, vector<8x16xbf16>,
    %c0_20 = arith.constant 0 : index
    %c87 = arith.constant 87 : index
    %37 = vector.load %arg4[%c0_20, %c87] : memref<8x812xbf16, #tpu.memory_space<vmem>>, vector<8x448xbf16>
    %c0_21 = arith.constant 0 : index
    %c0_22 = arith.constant 0 : index
    %38 = vector.load %arg5[%c0_21, %c0_22] : memref<200x896xbf16, #tpu.memory_space<vmem>>, vector<8x448xbf16>
    tpu.vector_store %arg5[%c0_21, %c0_22], %37 {strides = array<i32>} : memref<200x896xbf16, #tpu.memory_space<vmem>>, vector<8x448xbf16>,
    %c0_23 = arith.constant 0 : index
    %c90 = arith.constant 90 : index
    %39 = vector.load %arg4[%c0_23, %c90] : memref<8x812xbf16, #tpu.memory_space<vmem>>, vector<8x448xbf16>
    %c8 = arith.constant 8 : index
    %c0_24 = arith.constant 0 : index
    %40 = vector.load %arg5[%c8, %c0_24] : memref<200x896xbf16, #tpu.memory_space<vmem>>, vector<8x448xbf16>
    tpu.vector_store %arg5[%c8, %c0_24], %39 {strides = array<i32>} : memref<200x896xbf16, #tpu.memory_space<vmem>>, vector<8x448xbf16>,
    %c0_25 = arith.constant 0 : index
    %c93 = arith.constant 93 : index
    %41 = vector.load %arg4[%c0_25, %c93] : memref<8x812xbf16, #tpu.memory_space<vmem>>, vector<8x448xbf16>
    %c16 = arith.constant 16 : index
    %c0_26 = arith.constant 0 : index
    %42 = vector.load %arg5[%c16, %c0_26] : memref<200x896xbf16, #tpu.memory_space<vmem>>, vector<8x448xbf16>
    tpu.vector_store %arg5[%c16, %c0_26], %41 {strides = array<i32>} : memref<200x896xbf16, #tpu.memory_space<vmem>>, vector<8x448xbf16>,
    %c0_27 = arith.constant 0 : index
    %c171 = arith.constant 171 : index
    %43 = vector.load %arg4[%c0_27, %c171] : memref<8x812xbf16, #tpu.memory_space<vmem>>, vector<8x448xbf16>
    %c24 = arith.constant 24 : index
    %c0_28 = arith.constant 0 : index
    %44 = vector.load %arg5[%c24, %c0_28] : memref<200x896xbf16, #tpu.memory_space<vmem>>, vector<8x448xbf16>
    tpu.vector_store %arg5[%c24, %c0_28], %43 {strides = array<i32>} : memref<200x896xbf16, #tpu.memory_space<vmem>>, vector<8x448xbf16>,
    %c0_29 = arith.constant 0 : index
    %c174_30 = arith.constant 174 : index
    %45 = vector.load %arg4[%c0_29, %c174_30] : memref<8x812xbf16, #tpu.memory_space<vmem>>, vector<8x448xbf16>
    %c32 = arith.constant 32 : index
    %c0_31 = arith.constant 0 : index
    %46 = vector.load %arg5[%c32, %c0_31] : memref<200x896xbf16, #tpu.memory_space<vmem>>, vector<8x448xbf16>
    tpu.vector_store %arg5[%c32, %c0_31], %45 {strides = array<i32>} : memref<200x896xbf16, #tpu.memory_space<vmem>>, vector<8x448xbf16>,
    %c0_32 = arith.constant 0 : index
    %c177 = arith.constant 177 : index
    %47 = vector.load %arg4[%c0_32, %c177] : memref<8x812xbf16, #tpu.memory_space<vmem>>, vector<8x448xbf16>
    %c40 = arith.constant 40 : index
    %c0_33 = arith.constant 0 : index
    %48 = vector.load %arg5[%c40, %c0_33] : memref<200x896xbf16, #tpu.memory_space<vmem>>, vector<8x448xbf16>
    tpu.vector_store %arg5[%c40, %c0_33], %47 {strides = array<i32>} : memref<200x896xbf16, #tpu.memory_space<vmem>>, vector<8x448xbf16>,
    %c0_34 = arith.constant 0 : index
    %c255 = arith.constant 255 : index
    %49 = vector.load %arg4[%c0_34, %c255] : memref<8x812xbf16, #tpu.memory_space<vmem>>, vector<8x448xbf16>
    %c48 = arith.constant 48 : index
    %c0_35 = arith.constant 0 : index
    %50 = vector.load %arg5[%c48, %c0_35] : memref<200x896xbf16, #tpu.memory_space<vmem>>, vector<8x448xbf16>
    tpu.vector_store %arg5[%c48, %c0_35], %49 {strides = array<i32>} : memref<200x896xbf16, #tpu.memory_space<vmem>>, vector<8x448xbf16>,
    %c0_36 = arith.constant 0 : index
    %c258_37 = arith.constant 258 : index
    %51 = vector.load %arg4[%c0_36, %c258_37] : memref<8x812xbf16, #tpu.memory_space<vmem>>, vector<8x448xbf16>
    %c56 = arith.constant 56 : index
    %c0_38 = arith.constant 0 : index
    %52 = vector.load %arg5[%c56, %c0_38] : memref<200x896xbf16, #tpu.memory_space<vmem>>, vector<8x448xbf16>
    tpu.vector_store %arg5[%c56, %c0_38], %51 {strides = array<i32>} : memref<200x896xbf16, #tpu.memory_space<vmem>>, vector<8x448xbf16>,
    %c0_39 = arith.constant 0 : index
    %c261 = arith.constant 261 : index
    %53 = vector.load %arg4[%c0_39, %c261] : memref<8x812xbf16, #tpu.memory_space<vmem>>, vector<8x448xbf16>
    %c64 = arith.constant 64 : index
    %c0_40 = arith.constant 0 : index
    %54 = vector.load %arg5[%c64, %c0_40] : memref<200x896xbf16, #tpu.memory_space<vmem>>, vector<8x448xbf16>
    tpu.vector_store %arg5[%c64, %c0_40], %53 {strides = array<i32>} : memref<200x896xbf16, #tpu.memory_space<vmem>>, vector<8x448xbf16>,
    %c0_41 = arith.constant 0 : index
    %c145 = arith.constant 145 : index
    %55 = vector.load %arg4[%c0_41, %c145] : memref<8x812xbf16, #tpu.memory_space<vmem>>, vector<8x448xbf16>
    %c72 = arith.constant 72 : index
    %c0_42 = arith.constant 0 : index
    %56 = vector.load %arg5[%c72, %c0_42] : memref<200x896xbf16, #tpu.memory_space<vmem>>, vector<8x448xbf16>
    tpu.vector_store %arg5[%c72, %c0_42], %55 {strides = array<i32>} : memref<200x896xbf16, #tpu.memory_space<vmem>>, vector<8x448xbf16>,
    %c0_43 = arith.constant 0 : index
    %c146 = arith.constant 146 : index
    %57 = vector.load %arg4[%c0_43, %c146] : memref<8x812xbf16, #tpu.memory_space<vmem>>, vector<8x448xbf16>
    %c80 = arith.constant 80 : index
    %c0_44 = arith.constant 0 : index
    %58 = vector.load %arg5[%c80, %c0_44] : memref<200x896xbf16, #tpu.memory_space<vmem>>, vector<8x448xbf16>
    tpu.vector_store %arg5[%c80, %c0_44], %57 {strides = array<i32>} : memref<200x896xbf16, #tpu.memory_space<vmem>>, vector<8x448xbf16>,
    %c0_45 = arith.constant 0 : index
    %c147 = arith.constant 147 : index
    %59 = vector.load %arg4[%c0_45, %c147] : memref<8x812xbf16, #tpu.memory_space<vmem>>, vector<8x448xbf16>
    %c88 = arith.constant 88 : index
    %c0_46 = arith.constant 0 : index
    %60 = vector.load %arg5[%c88, %c0_46] : memref<200x896xbf16, #tpu.memory_space<vmem>>, vector<8x448xbf16>
    tpu.vector_store %arg5[%c88, %c0_46], %59 {strides = array<i32>} : memref<200x896xbf16, #tpu.memory_space<vmem>>, vector<8x448xbf16>,
    %c0_47 = arith.constant 0 : index
    %c173 = arith.constant 173 : index
    %61 = vector.load %arg4[%c0_47, %c173] : memref<8x812xbf16, #tpu.memory_space<vmem>>, vector<8x448xbf16>
    %c96 = arith.constant 96 : index
    %c0_48 = arith.constant 0 : index
    %62 = vector.load %arg5[%c96, %c0_48] : memref<200x896xbf16, #tpu.memory_space<vmem>>, vector<8x448xbf16>
    tpu.vector_store %arg5[%c96, %c0_48], %61 {strides = array<i32>} : memref<200x896xbf16, #tpu.memory_space<vmem>>, vector<8x448xbf16>,
    %c0_49 = arith.constant 0 : index
    %c175 = arith.constant 175 : index
    %63 = vector.load %arg4[%c0_49, %c175] : memref<8x812xbf16, #tpu.memory_space<vmem>>, vector<8x448xbf16>
    %c104 = arith.constant 104 : index
    %c0_50 = arith.constant 0 : index
    %64 = vector.load %arg5[%c104, %c0_50] : memref<200x896xbf16, #tpu.memory_space<vmem>>, vector<8x448xbf16>
    tpu.vector_store %arg5[%c104, %c0_50], %63 {strides = array<i32>} : memref<200x896xbf16, #tpu.memory_space<vmem>>, vector<8x448xbf16>,
    %c0_51 = arith.constant 0 : index
    %c201 = arith.constant 201 : index
    %65 = vector.load %arg4[%c0_51, %c201] : memref<8x812xbf16, #tpu.memory_space<vmem>>, vector<8x448xbf16>
    %c112 = arith.constant 112 : index
    %c0_52 = arith.constant 0 : index
    %66 = vector.load %arg5[%c112, %c0_52] : memref<200x896xbf16, #tpu.memory_space<vmem>>, vector<8x448xbf16>
    tpu.vector_store %arg5[%c112, %c0_52], %65 {strides = array<i32>} : memref<200x896xbf16, #tpu.memory_space<vmem>>, vector<8x448xbf16>,
    %c0_53 = arith.constant 0 : index
    %c202_54 = arith.constant 202 : index
    %67 = vector.load %arg4[%c0_53, %c202_54] : memref<8x812xbf16, #tpu.memory_space<vmem>>, vector<8x448xbf16>
    %c120 = arith.constant 120 : index
    %c0_55 = arith.constant 0 : index
    %68 = vector.load %arg5[%c120, %c0_55] : memref<200x896xbf16, #tpu.memory_space<vmem>>, vector<8x448xbf16>
    tpu.vector_store %arg5[%c120, %c0_55], %67 {strides = array<i32>} : memref<200x896xbf16, #tpu.memory_space<vmem>>, vector<8x448xbf16>,
    %c0_56 = arith.constant 0 : index
    %c203 = arith.constant 203 : index
    %69 = vector.load %arg4[%c0_56, %c203] : memref<8x812xbf16, #tpu.memory_space<vmem>>, vector<8x448xbf16>
    %c128 = arith.constant 128 : index
    %c0_57 = arith.constant 0 : index
    %70 = vector.load %arg5[%c128, %c0_57] : memref<200x896xbf16, #tpu.memory_space<vmem>>, vector<8x448xbf16>
    tpu.vector_store %arg5[%c128, %c0_57], %69 {strides = array<i32>} : memref<200x896xbf16, #tpu.memory_space<vmem>>, vector<8x448xbf16>,
    %c0_58 = arith.constant 0 : index
    %c0_59 = arith.constant 0 : index
    %71 = vector.load %arg4[%c0_58, %c0_59] : memref<8x812xbf16, #tpu.memory_space<vmem>>, vector<8x448xbf16>
    %c136 = arith.constant 136 : index
    %c0_60 = arith.constant 0 : index
    %72 = vector.load %arg5[%c136, %c0_60] : memref<200x896xbf16, #tpu.memory_space<vmem>>, vector<8x448xbf16>
    tpu.vector_store %arg5[%c136, %c0_60], %71 {strides = array<i32>} : memref<200x896xbf16, #tpu.memory_space<vmem>>, vector<8x448xbf16>,
    %c0_61 = arith.constant 0 : index
    %c6 = arith.constant 6 : index
    %73 = vector.load %arg4[%c0_61, %c6] : memref<8x812xbf16, #tpu.memory_space<vmem>>, vector<8x448xbf16>
    %c144 = arith.constant 144 : index
    %c0_62 = arith.constant 0 : index
    %74 = vector.load %arg5[%c144, %c0_62] : memref<200x896xbf16, #tpu.memory_space<vmem>>, vector<8x448xbf16>
    tpu.vector_store %arg5[%c144, %c0_62], %73 {strides = array<i32>} : memref<200x896xbf16, #tpu.memory_space<vmem>>, vector<8x448xbf16>,
    %c0_63 = arith.constant 0 : index
    %c12 = arith.constant 12 : index
    %75 = vector.load %arg4[%c0_63, %c12] : memref<8x812xbf16, #tpu.memory_space<vmem>>, vector<8x448xbf16>
    %c152 = arith.constant 152 : index
    %c0_64 = arith.constant 0 : index
    %76 = vector.load %arg5[%c152, %c0_64] : memref<200x896xbf16, #tpu.memory_space<vmem>>, vector<8x448xbf16>
    tpu.vector_store %arg5[%c152, %c0_64], %75 {strides = array<i32>} : memref<200x896xbf16, #tpu.memory_space<vmem>>, vector<8x448xbf16>,
    %c0_65 = arith.constant 0 : index
    %c168 = arith.constant 168 : index
    %77 = vector.load %arg4[%c0_65, %c168] : memref<8x812xbf16, #tpu.memory_space<vmem>>, vector<8x448xbf16>
    %c160 = arith.constant 160 : index
    %c0_66 = arith.constant 0 : index
    %78 = vector.load %arg5[%c160, %c0_66] : memref<200x896xbf16, #tpu.memory_space<vmem>>, vector<8x448xbf16>
    tpu.vector_store %arg5[%c160, %c0_66], %77 {strides = array<i32>} : memref<200x896xbf16, #tpu.memory_space<vmem>>, vector<8x448xbf16>,
    %c0_67 = arith.constant 0 : index
    %c180 = arith.constant 180 : index
    %79 = vector.load %arg4[%c0_67, %c180] : memref<8x812xbf16, #tpu.memory_space<vmem>>, vector<8x448xbf16>
    %c168_68 = arith.constant 168 : index
    %c0_69 = arith.constant 0 : index
    %80 = vector.load %arg5[%c168_68, %c0_69] : memref<200x896xbf16, #tpu.memory_space<vmem>>, vector<8x448xbf16>
    tpu.vector_store %arg5[%c168_68, %c0_69], %79 {strides = array<i32>} : memref<200x896xbf16, #tpu.memory_space<vmem>>, vector<8x448xbf16>,
    %c0_70 = arith.constant 0 : index
    %c336 = arith.constant 336 : index
    %81 = vector.load %arg4[%c0_70, %c336] : memref<8x812xbf16, #tpu.memory_space<vmem>>, vector<8x448xbf16>
    %c176 = arith.constant 176 : index
    %c0_71 = arith.constant 0 : index
    %82 = vector.load %arg5[%c176, %c0_71] : memref<200x896xbf16, #tpu.memory_space<vmem>>, vector<8x448xbf16>
    tpu.vector_store %arg5[%c176, %c0_71], %81 {strides = array<i32>} : memref<200x896xbf16, #tpu.memory_space<vmem>>, vector<8x448xbf16>,
    %c0_72 = arith.constant 0 : index
    %c342_73 = arith.constant 342 : index
    %83 = vector.load %arg4[%c0_72, %c342_73] : memref<8x812xbf16, #tpu.memory_space<vmem>>, vector<8x448xbf16>
    %c184 = arith.constant 184 : index
    %c0_74 = arith.constant 0 : index
    %84 = vector.load %arg5[%c184, %c0_74] : memref<200x896xbf16, #tpu.memory_space<vmem>>, vector<8x448xbf16>
    tpu.vector_store %arg5[%c184, %c0_74], %83 {strides = array<i32>} : memref<200x896xbf16, #tpu.memory_space<vmem>>, vector<8x448xbf16>,
    %c0_75 = arith.constant 0 : index
    %c348 = arith.constant 348 : index
    %85 = vector.load %arg4[%c0_75, %c348] : memref<8x812xbf16, #tpu.memory_space<vmem>>, vector<8x448xbf16>
    %c192 = arith.constant 192 : index
    %c0_76 = arith.constant 0 : index
    %86 = vector.load %arg5[%c192, %c0_76] : memref<200x896xbf16, #tpu.memory_space<vmem>>, vector<8x448xbf16>
    tpu.vector_store %arg5[%c192, %c0_76], %85 {strides = array<i32>} : memref<200x896xbf16, #tpu.memory_space<vmem>>, vector<8x448xbf16>,
    %c1 = arith.constant 1 : index
    %c0_77 = arith.constant 0 : index
    %c0_78 = arith.constant 0 : index
    %87 = vector.load %arg1[%c1, %c0_77, %c0_78] : memref<2x8x256xf32, #tpu.memory_space<vmem>>, vector<1x8x256xf32>
    %88 = vector.shape_cast %87 : vector<1x8x256xf32> to vector<8x256xf32>
    %89 = arith.truncf %88 : vector<8x256xf32> to vector<8x256xbf16>
    %90 = vector.extract_strided_slice %89 {offsets = [0, 0], sizes = [8, 16], strides = [1, 1]} : vector<8x256xbf16> to vector<8x16xbf16>
    %c0_79 = arith.constant 0 : index
    %c174_80 = arith.constant 174 : index
    %91 = vector.load %arg4[%c0_79, %c174_80] : memref<8x812xbf16, #tpu.memory_space<vmem>>, vector<8x16xbf16>
    tpu.vector_store %arg4[%c0_79, %c174_80], %90 {strides = array<i32>} : memref<8x812xbf16, #tpu.memory_space<vmem>>, vector<8x16xbf16>,
    %92 = vector.extract_strided_slice %89 {offsets = [0, 16], sizes = [8, 16], strides = [1, 1]} : vector<8x256xbf16> to vector<8x16xbf16>
    %c0_81 = arith.constant 0 : index
    %c202_82 = arith.constant 202 : index
    %93 = vector.load %arg4[%c0_81, %c202_82] : memref<8x812xbf16, #tpu.memory_space<vmem>>, vector<8x16xbf16>
    tpu.vector_store %arg4[%c0_81, %c202_82], %92 {strides = array<i32>} : memref<8x812xbf16, #tpu.memory_space<vmem>>, vector<8x16xbf16>,
    %94 = vector.extract_strided_slice %89 {offsets = [0, 32], sizes = [8, 16], strides = [1, 1]} : vector<8x256xbf16> to vector<8x16xbf16>
    %c0_83 = arith.constant 0 : index
    %c230_84 = arith.constant 230 : index
    %95 = vector.load %arg4[%c0_83, %c230_84] : memref<8x812xbf16, #tpu.memory_space<vmem>>, vector<8x16xbf16>
    tpu.vector_store %arg4[%c0_83, %c230_84], %94 {strides = array<i32>} : memref<8x812xbf16, #tpu.memory_space<vmem>>, vector<8x16xbf16>,
    %96 = vector.extract_strided_slice %89 {offsets = [0, 48], sizes = [8, 16], strides = [1, 1]} : vector<8x256xbf16> to vector<8x16xbf16>
    %c0_85 = arith.constant 0 : index
    %c258_86 = arith.constant 258 : index
    %97 = vector.load %arg4[%c0_85, %c258_86] : memref<8x812xbf16, #tpu.memory_space<vmem>>, vector<8x16xbf16>
    tpu.vector_store %arg4[%c0_85, %c258_86], %96 {strides = array<i32>} : memref<8x812xbf16, #tpu.memory_space<vmem>>, vector<8x16xbf16>,
    %98 = vector.extract_strided_slice %89 {offsets = [0, 64], sizes = [8, 16], strides = [1, 1]} : vector<8x256xbf16> to vector<8x16xbf16>
    %c0_87 = arith.constant 0 : index
    %c286_88 = arith.constant 286 : index
    %99 = vector.load %arg4[%c0_87, %c286_88] : memref<8x812xbf16, #tpu.memory_space<vmem>>, vector<8x16xbf16>
    tpu.vector_store %arg4[%c0_87, %c286_88], %98 {strides = array<i32>} : memref<8x812xbf16, #tpu.memory_space<vmem>>, vector<8x16xbf16>,
    %100 = vector.extract_strided_slice %89 {offsets = [0, 80], sizes = [8, 16], strides = [1, 1]} : vector<8x256xbf16> to vector<8x16xbf16>
    %c0_89 = arith.constant 0 : index
    %c314_90 = arith.constant 314 : index
    %101 = vector.load %arg4[%c0_89, %c314_90] : memref<8x812xbf16, #tpu.memory_space<vmem>>, vector<8x16xbf16>
    tpu.vector_store %arg4[%c0_89, %c314_90], %100 {strides = array<i32>} : memref<8x812xbf16, #tpu.memory_space<vmem>>, vector<8x16xbf16>,
    %102 = vector.extract_strided_slice %89 {offsets = [0, 96], sizes = [8, 16], strides = [1, 1]} : vector<8x256xbf16> to vector<8x16xbf16>
    %c0_91 = arith.constant 0 : index
    %c342_92 = arith.constant 342 : index
    %103 = vector.load %arg4[%c0_91, %c342_92] : memref<8x812xbf16, #tpu.memory_space<vmem>>, vector<8x16xbf16>
    tpu.vector_store %arg4[%c0_91, %c342_92], %102 {strides = array<i32>} : memref<8x812xbf16, #tpu.memory_space<vmem>>, vector<8x16xbf16>,
    %104 = vector.extract_strided_slice %89 {offsets = [0, 112], sizes = [8, 16], strides = [1, 1]} : vector<8x256xbf16> to vector<8x16xbf16>
    %c0_93 = arith.constant 0 : index
    %c370_94 = arith.constant 370 : index
    %105 = vector.load %arg4[%c0_93, %c370_94] : memref<8x812xbf16, #tpu.memory_space<vmem>>, vector<8x16xbf16>
    tpu.vector_store %arg4[%c0_93, %c370_94], %104 {strides = array<i32>} : memref<8x812xbf16, #tpu.memory_space<vmem>>, vector<8x16xbf16>,
    %106 = vector.extract_strided_slice %89 {offsets = [0, 128], sizes = [8, 16], strides = [1, 1]} : vector<8x256xbf16> to vector<8x16xbf16>
    %c0_95 = arith.constant 0 : index
    %c398_96 = arith.constant 398 : index
    %107 = vector.load %arg4[%c0_95, %c398_96] : memref<8x812xbf16, #tpu.memory_space<vmem>>, vector<8x16xbf16>
    tpu.vector_store %arg4[%c0_95, %c398_96], %106 {strides = array<i32>} : memref<8x812xbf16, #tpu.memory_space<vmem>>, vector<8x16xbf16>,
    %108 = vector.extract_strided_slice %89 {offsets = [0, 144], sizes = [8, 16], strides = [1, 1]} : vector<8x256xbf16> to vector<8x16xbf16>
    %c0_97 = arith.constant 0 : index
    %c426_98 = arith.constant 426 : index
    %109 = vector.load %arg4[%c0_97, %c426_98] : memref<8x812xbf16, #tpu.memory_space<vmem>>, vector<8x16xbf16>
    tpu.vector_store %arg4[%c0_97, %c426_98], %108 {strides = array<i32>} : memref<8x812xbf16, #tpu.memory_space<vmem>>, vector<8x16xbf16>,
    %110 = vector.extract_strided_slice %89 {offsets = [0, 160], sizes = [8, 16], strides = [1, 1]} : vector<8x256xbf16> to vector<8x16xbf16>
    %c0_99 = arith.constant 0 : index
    %c454_100 = arith.constant 454 : index
    %111 = vector.load %arg4[%c0_99, %c454_100] : memref<8x812xbf16, #tpu.memory_space<vmem>>, vector<8x16xbf16>
    tpu.vector_store %arg4[%c0_99, %c454_100], %110 {strides = array<i32>} : memref<8x812xbf16, #tpu.memory_space<vmem>>, vector<8x16xbf16>,
    %112 = vector.extract_strided_slice %89 {offsets = [0, 176], sizes = [8, 16], strides = [1, 1]} : vector<8x256xbf16> to vector<8x16xbf16>
    %c0_101 = arith.constant 0 : index
    %c482_102 = arith.constant 482 : index
    %113 = vector.load %arg4[%c0_101, %c482_102] : memref<8x812xbf16, #tpu.memory_space<vmem>>, vector<8x16xbf16>
    tpu.vector_store %arg4[%c0_101, %c482_102], %112 {strides = array<i32>} : memref<8x812xbf16, #tpu.memory_space<vmem>>, vector<8x16xbf16>,
    %114 = vector.extract_strided_slice %89 {offsets = [0, 192], sizes = [8, 16], strides = [1, 1]} : vector<8x256xbf16> to vector<8x16xbf16>
    %c0_103 = arith.constant 0 : index
    %c510_104 = arith.constant 510 : index
    %115 = vector.load %arg4[%c0_103, %c510_104] : memref<8x812xbf16, #tpu.memory_space<vmem>>, vector<8x16xbf16>
    tpu.vector_store %arg4[%c0_103, %c510_104], %114 {strides = array<i32>} : memref<8x812xbf16, #tpu.memory_space<vmem>>, vector<8x16xbf16>,
    %116 = vector.extract_strided_slice %89 {offsets = [0, 208], sizes = [8, 16], strides = [1, 1]} : vector<8x256xbf16> to vector<8x16xbf16>
    %c0_105 = arith.constant 0 : index
    %c538_106 = arith.constant 538 : index
    %117 = vector.load %arg4[%c0_105, %c538_106] : memref<8x812xbf16, #tpu.memory_space<vmem>>, vector<8x16xbf16>
    tpu.vector_store %arg4[%c0_105, %c538_106], %116 {strides = array<i32>} : memref<8x812xbf16, #tpu.memory_space<vmem>>, vector<8x16xbf16>,
    %118 = vector.extract_strided_slice %89 {offsets = [0, 224], sizes = [8, 16], strides = [1, 1]} : vector<8x256xbf16> to vector<8x16xbf16>
    %c0_107 = arith.constant 0 : index
    %c566_108 = arith.constant 566 : index
    %119 = vector.load %arg4[%c0_107, %c566_108] : memref<8x812xbf16, #tpu.memory_space<vmem>>, vector<8x16xbf16>
    tpu.vector_store %arg4[%c0_107, %c566_108], %118 {strides = array<i32>} : memref<8x812xbf16, #tpu.memory_space<vmem>>, vector<8x16xbf16>,
    %120 = vector.extract_strided_slice %89 {offsets = [0, 240], sizes = [8, 16], strides = [1, 1]} : vector<8x256xbf16> to vector<8x16xbf16>
    %c0_109 = arith.constant 0 : index
    %c594_110 = arith.constant 594 : index
    %121 = vector.load %arg4[%c0_109, %c594_110] : memref<8x812xbf16, #tpu.memory_space<vmem>>, vector<8x16xbf16>
    tpu.vector_store %arg4[%c0_109, %c594_110], %120 {strides = array<i32>} : memref<8x812xbf16, #tpu.memory_space<vmem>>, vector<8x16xbf16>,
    %c0_111 = arith.constant 0 : index
    %c87_112 = arith.constant 87 : index
    %122 = vector.load %arg4[%c0_111, %c87_112] : memref<8x812xbf16, #tpu.memory_space<vmem>>, vector<8x448xbf16>
    %c0_113 = arith.constant 0 : index
    %c448 = arith.constant 448 : index
    %123 = vector.load %arg5[%c0_113, %c448] : memref<200x896xbf16, #tpu.memory_space<vmem>>, vector<8x448xbf16>
    tpu.vector_store %arg5[%c0_113, %c448], %122 {strides = array<i32>} : memref<200x896xbf16, #tpu.memory_space<vmem>>, vector<8x448xbf16>,
    %c0_114 = arith.constant 0 : index
    %c90_115 = arith.constant 90 : index
    %124 = vector.load %arg4[%c0_114, %c90_115] : memref<8x812xbf16, #tpu.memory_space<vmem>>, vector<8x448xbf16>
    %c8_116 = arith.constant 8 : index
    %c448_117 = arith.constant 448 : index
    %125 = vector.load %arg5[%c8_116, %c448_117] : memref<200x896xbf16, #tpu.memory_space<vmem>>, vector<8x448xbf16>
    tpu.vector_store %arg5[%c8_116, %c448_117], %124 {strides = array<i32>} : memref<200x896xbf16, #tpu.memory_space<vmem>>, vector<8x448xbf16>,
    %c0_118 = arith.constant 0 : index
    %c93_119 = arith.constant 93 : index
    %126 = vector.load %arg4[%c0_118, %c93_119] : memref<8x812xbf16, #tpu.memory_space<vmem>>, vector<8x448xbf16>
    %c16_120 = arith.constant 16 : index
    %c448_121 = arith.constant 448 : index
    %127 = vector.load %arg5[%c16_120, %c448_121] : memref<200x896xbf16, #tpu.memory_space<vmem>>, vector<8x448xbf16>
    tpu.vector_store %arg5[%c16_120, %c448_121], %126 {strides = array<i32>} : memref<200x896xbf16, #tpu.memory_space<vmem>>, vector<8x448xbf16>,
    %c0_122 = arith.constant 0 : index
    %c171_123 = arith.constant 171 : index
    %128 = vector.load %arg4[%c0_122, %c171_123] : memref<8x812xbf16, #tpu.memory_space<vmem>>, vector<8x448xbf16>
    %c24_124 = arith.constant 24 : index
    %c448_125 = arith.constant 448 : index
    %129 = vector.load %arg5[%c24_124, %c448_125] : memref<200x896xbf16, #tpu.memory_space<vmem>>, vector<8x448xbf16>
    tpu.vector_store %arg5[%c24_124, %c448_125], %128 {strides = array<i32>} : memref<200x896xbf16, #tpu.memory_space<vmem>>, vector<8x448xbf16>,
    %c0_126 = arith.constant 0 : index
    %c174_127 = arith.constant 174 : index
    %130 = vector.load %arg4[%c0_126, %c174_127] : memref<8x812xbf16, #tpu.memory_space<vmem>>, vector<8x448xbf16>
    %c32_128 = arith.constant 32 : index
    %c448_129 = arith.constant 448 : index
    %131 = vector.load %arg5[%c32_128, %c448_129] : memref<200x896xbf16, #tpu.memory_space<vmem>>, vector<8x448xbf16>
    tpu.vector_store %arg5[%c32_128, %c448_129], %130 {strides = array<i32>} : memref<200x896xbf16, #tpu.memory_space<vmem>>, vector<8x448xbf16>,
    %c0_130 = arith.constant 0 : index
    %c177_131 = arith.constant 177 : index
    %132 = vector.load %arg4[%c0_130, %c177_131] : memref<8x812xbf16, #tpu.memory_space<vmem>>, vector<8x448xbf16>
    %c40_132 = arith.constant 40 : index
    %c448_133 = arith.constant 448 : index
    %133 = vector.load %arg5[%c40_132, %c448_133] : memref<200x896xbf16, #tpu.memory_space<vmem>>, vector<8x448xbf16>
    tpu.vector_store %arg5[%c40_132, %c448_133], %132 {strides = array<i32>} : memref<200x896xbf16, #tpu.memory_space<vmem>>, vector<8x448xbf16>,
    %c0_134 = arith.constant 0 : index
    %c255_135 = arith.constant 255 : index
    %134 = vector.load %arg4[%c0_134, %c255_135] : memref<8x812xbf16, #tpu.memory_space<vmem>>, vector<8x448xbf16>
    %c48_136 = arith.constant 48 : index
    %c448_137 = arith.constant 448 : index
    %135 = vector.load %arg5[%c48_136, %c448_137] : memref<200x896xbf16, #tpu.memory_space<vmem>>, vector<8x448xbf16>
    tpu.vector_store %arg5[%c48_136, %c448_137], %134 {strides = array<i32>} : memref<200x896xbf16, #tpu.memory_space<vmem>>, vector<8x448xbf16>,
    %c0_138 = arith.constant 0 : index
    %c258_139 = arith.constant 258 : index
    %136 = vector.load %arg4[%c0_138, %c258_139] : memref<8x812xbf16, #tpu.memory_space<vmem>>, vector<8x448xbf16>
    %c56_140 = arith.constant 56 : index
    %c448_141 = arith.constant 448 : index
    %137 = vector.load %arg5[%c56_140, %c448_141] : memref<200x896xbf16, #tpu.memory_space<vmem>>, vector<8x448xbf16>
    tpu.vector_store %arg5[%c56_140, %c448_141], %136 {strides = array<i32>} : memref<200x896xbf16, #tpu.memory_space<vmem>>, vector<8x448xbf16>,
    %c0_142 = arith.constant 0 : index
    %c261_143 = arith.constant 261 : index
    %138 = vector.load %arg4[%c0_142, %c261_143] : memref<8x812xbf16, #tpu.memory_space<vmem>>, vector<8x448xbf16>
    %c64_144 = arith.constant 64 : index
    %c448_145 = arith.constant 448 : index
    %139 = vector.load %arg5[%c64_144, %c448_145] : memref<200x896xbf16, #tpu.memory_space<vmem>>, vector<8x448xbf16>
    tpu.vector_store %arg5[%c64_144, %c448_145], %138 {strides = array<i32>} : memref<200x896xbf16, #tpu.memory_space<vmem>>, vector<8x448xbf16>,
    %c0_146 = arith.constant 0 : index
    %c145_147 = arith.constant 145 : index
    %140 = vector.load %arg4[%c0_146, %c145_147] : memref<8x812xbf16, #tpu.memory_space<vmem>>, vector<8x448xbf16>
    %c72_148 = arith.constant 72 : index
    %c448_149 = arith.constant 448 : index
    %141 = vector.load %arg5[%c72_148, %c448_149] : memref<200x896xbf16, #tpu.memory_space<vmem>>, vector<8x448xbf16>
    tpu.vector_store %arg5[%c72_148, %c448_149], %140 {strides = array<i32>} : memref<200x896xbf16, #tpu.memory_space<vmem>>, vector<8x448xbf16>,
    %c0_150 = arith.constant 0 : index
    %c146_151 = arith.constant 146 : index
    %142 = vector.load %arg4[%c0_150, %c146_151] : memref<8x812xbf16, #tpu.memory_space<vmem>>, vector<8x448xbf16>
    %c80_152 = arith.constant 80 : index
    %c448_153 = arith.constant 448 : index
    %143 = vector.load %arg5[%c80_152, %c448_153] : memref<200x896xbf16, #tpu.memory_space<vmem>>, vector<8x448xbf16>
    tpu.vector_store %arg5[%c80_152, %c448_153], %142 {strides = array<i32>} : memref<200x896xbf16, #tpu.memory_space<vmem>>, vector<8x448xbf16>,
    %c0_154 = arith.constant 0 : index
    %c147_155 = arith.constant 147 : index
    %144 = vector.load %arg4[%c0_154, %c147_155] : memref<8x812xbf16, #tpu.memory_space<vmem>>, vector<8x448xbf16>
    %c88_156 = arith.constant 88 : index
    %c448_157 = arith.constant 448 : index
    %145 = vector.load %arg5[%c88_156, %c448_157] : memref<200x896xbf16, #tpu.memory_space<vmem>>, vector<8x448xbf16>
    tpu.vector_store %arg5[%c88_156, %c448_157], %144 {strides = array<i32>} : memref<200x896xbf16, #tpu.memory_space<vmem>>, vector<8x448xbf16>,
    %c0_158 = arith.constant 0 : index
    %c173_159 = arith.constant 173 : index
    %146 = vector.load %arg4[%c0_158, %c173_159] : memref<8x812xbf16, #tpu.memory_space<vmem>>, vector<8x448xbf16>
    %c96_160 = arith.constant 96 : index
    %c448_161 = arith.constant 448 : index
    %147 = vector.load %arg5[%c96_160, %c448_161] : memref<200x896xbf16, #tpu.memory_space<vmem>>, vector<8x448xbf16>
    tpu.vector_store %arg5[%c96_160, %c448_161], %146 {strides = array<i32>} : memref<200x896xbf16, #tpu.memory_space<vmem>>, vector<8x448xbf16>,
    %c0_162 = arith.constant 0 : index
    %c175_163 = arith.constant 175 : index
    %148 = vector.load %arg4[%c0_162, %c175_163] : memref<8x812xbf16, #tpu.memory_space<vmem>>, vector<8x448xbf16>
    %c104_164 = arith.constant 104 : index
    %c448_165 = arith.constant 448 : index
    %149 = vector.load %arg5[%c104_164, %c448_165] : memref<200x896xbf16, #tpu.memory_space<vmem>>, vector<8x448xbf16>
    tpu.vector_store %arg5[%c104_164, %c448_165], %148 {strides = array<i32>} : memref<200x896xbf16, #tpu.memory_space<vmem>>, vector<8x448xbf16>,
    %c0_166 = arith.constant 0 : index
    %c201_167 = arith.constant 201 : index
    %150 = vector.load %arg4[%c0_166, %c201_167] : memref<8x812xbf16, #tpu.memory_space<vmem>>, vector<8x448xbf16>
    %c112_168 = arith.constant 112 : index
    %c448_169 = arith.constant 448 : index
    %151 = vector.load %arg5[%c112_168, %c448_169] : memref<200x896xbf16, #tpu.memory_space<vmem>>, vector<8x448xbf16>
    tpu.vector_store %arg5[%c112_168, %c448_169], %150 {strides = array<i32>} : memref<200x896xbf16, #tpu.memory_space<vmem>>, vector<8x448xbf16>,
    %c0_170 = arith.constant 0 : index
    %c202_171 = arith.constant 202 : index
    %152 = vector.load %arg4[%c0_170, %c202_171] : memref<8x812xbf16, #tpu.memory_space<vmem>>, vector<8x448xbf16>
    %c120_172 = arith.constant 120 : index
    %c448_173 = arith.constant 448 : index
    %153 = vector.load %arg5[%c120_172, %c448_173] : memref<200x896xbf16, #tpu.memory_space<vmem>>, vector<8x448xbf16>
    tpu.vector_store %arg5[%c120_172, %c448_173], %152 {strides = array<i32>} : memref<200x896xbf16, #tpu.memory_space<vmem>>, vector<8x448xbf16>,
    %c0_174 = arith.constant 0 : index
    %c203_175 = arith.constant 203 : index
    %154 = vector.load %arg4[%c0_174, %c203_175] : memref<8x812xbf16, #tpu.memory_space<vmem>>, vector<8x448xbf16>
    %c128_176 = arith.constant 128 : index
    %c448_177 = arith.constant 448 : index
    %155 = vector.load %arg5[%c128_176, %c448_177] : memref<200x896xbf16, #tpu.memory_space<vmem>>, vector<8x448xbf16>
    tpu.vector_store %arg5[%c128_176, %c448_177], %154 {strides = array<i32>} : memref<200x896xbf16, #tpu.memory_space<vmem>>, vector<8x448xbf16>,
    %c0_178 = arith.constant 0 : index
    %c0_179 = arith.constant 0 : index
    %156 = vector.load %arg4[%c0_178, %c0_179] : memref<8x812xbf16, #tpu.memory_space<vmem>>, vector<8x448xbf16>
    %c136_180 = arith.constant 136 : index
    %c448_181 = arith.constant 448 : index
    %157 = vector.load %arg5[%c136_180, %c448_181] : memref<200x896xbf16, #tpu.memory_space<vmem>>, vector<8x448xbf16>
    tpu.vector_store %arg5[%c136_180, %c448_181], %156 {strides = array<i32>} : memref<200x896xbf16, #tpu.memory_space<vmem>>, vector<8x448xbf16>,
    %c0_182 = arith.constant 0 : index
    %c6_183 = arith.constant 6 : index
    %158 = vector.load %arg4[%c0_182, %c6_183] : memref<8x812xbf16, #tpu.memory_space<vmem>>, vector<8x448xbf16>
    %c144_184 = arith.constant 144 : index
    %c448_185 = arith.constant 448 : index
    %159 = vector.load %arg5[%c144_184, %c448_185] : memref<200x896xbf16, #tpu.memory_space<vmem>>, vector<8x448xbf16>
    tpu.vector_store %arg5[%c144_184, %c448_185], %158 {strides = array<i32>} : memref<200x896xbf16, #tpu.memory_space<vmem>>, vector<8x448xbf16>,
    %c0_186 = arith.constant 0 : index
    %c12_187 = arith.constant 12 : index
    %160 = vector.load %arg4[%c0_186, %c12_187] : memref<8x812xbf16, #tpu.memory_space<vmem>>, vector<8x448xbf16>
    %c152_188 = arith.constant 152 : index
    %c448_189 = arith.constant 448 : index
    %161 = vector.load %arg5[%c152_188, %c448_189] : memref<200x896xbf16, #tpu.memory_space<vmem>>, vector<8x448xbf16>
    tpu.vector_store %arg5[%c152_188, %c448_189], %160 {strides = array<i32>} : memref<200x896xbf16, #tpu.memory_space<vmem>>, vector<8x448xbf16>,
    %c0_190 = arith.constant 0 : index
    %c168_191 = arith.constant 168 : index
    %162 = vector.load %arg4[%c0_190, %c168_191] : memref<8x812xbf16, #tpu.memory_space<vmem>>, vector<8x448xbf16>
    %c160_192 = arith.constant 160 : index
    %c448_193 = arith.constant 448 : index
    %163 = vector.load %arg5[%c160_192, %c448_193] : memref<200x896xbf16, #tpu.memory_space<vmem>>, vector<8x448xbf16>
    tpu.vector_store %arg5[%c160_192, %c448_193], %162 {strides = array<i32>} : memref<200x896xbf16, #tpu.memory_space<vmem>>, vector<8x448xbf16>,
    %c0_194 = arith.constant 0 : index
    %c180_195 = arith.constant 180 : index
    %164 = vector.load %arg4[%c0_194, %c180_195] : memref<8x812xbf16, #tpu.memory_space<vmem>>, vector<8x448xbf16>
    %c168_196 = arith.constant 168 : index
    %c448_197 = arith.constant 448 : index
    %165 = vector.load %arg5[%c168_196, %c448_197] : memref<200x896xbf16, #tpu.memory_space<vmem>>, vector<8x448xbf16>
    tpu.vector_store %arg5[%c168_196, %c448_197], %164 {strides = array<i32>} : memref<200x896xbf16, #tpu.memory_space<vmem>>, vector<8x448xbf16>,
    %c0_198 = arith.constant 0 : index
    %c336_199 = arith.constant 336 : index
    %166 = vector.load %arg4[%c0_198, %c336_199] : memref<8x812xbf16, #tpu.memory_space<vmem>>, vector<8x448xbf16>
    %c176_200 = arith.constant 176 : index
    %c448_201 = arith.constant 448 : index
    %167 = vector.load %arg5[%c176_200, %c448_201] : memref<200x896xbf16, #tpu.memory_space<vmem>>, vector<8x448xbf16>
    tpu.vector_store %arg5[%c176_200, %c448_201], %166 {strides = array<i32>} : memref<200x896xbf16, #tpu.memory_space<vmem>>, vector<8x448xbf16>,
    %c0_202 = arith.constant 0 : index
    %c342_203 = arith.constant 342 : index
    %168 = vector.load %arg4[%c0_202, %c342_203] : memref<8x812xbf16, #tpu.memory_space<vmem>>, vector<8x448xbf16>
    %c184_204 = arith.constant 184 : index
    %c448_205 = arith.constant 448 : index
    %169 = vector.load %arg5[%c184_204, %c448_205] : memref<200x896xbf16, #tpu.memory_space<vmem>>, vector<8x448xbf16>
    tpu.vector_store %arg5[%c184_204, %c448_205], %168 {strides = array<i32>} : memref<200x896xbf16, #tpu.memory_space<vmem>>, vector<8x448xbf16>,
    %c0_206 = arith.constant 0 : index
    %c348_207 = arith.constant 348 : index
    %170 = vector.load %arg4[%c0_206, %c348_207] : memref<8x812xbf16, #tpu.memory_space<vmem>>, vector<8x448xbf16>
    %c192_208 = arith.constant 192 : index
    %c448_209 = arith.constant 448 : index
    %171 = vector.load %arg5[%c192_208, %c448_209] : memref<200x896xbf16, #tpu.memory_space<vmem>>, vector<8x448xbf16>
    tpu.vector_store %arg5[%c192_208, %c448_209], %170 {strides = array<i32>} : memref<200x896xbf16, #tpu.memory_space<vmem>>, vector<8x448xbf16>,
    %c0_210 = arith.constant 0 : index
    %c0_211 = arith.constant 0 : index
    %172 = vector.load %arg2[%c0_210, %c0_211] : memref<8x200xbf16, #tpu.memory_space<vmem>>, vector<8x200xbf16>
    %c0_212 = arith.constant 0 : index
    %c0_213 = arith.constant 0 : index
    %173 = vector.load %arg5[%c0_212, %c0_213] : memref<200x896xbf16, #tpu.memory_space<vmem>>, vector<200x896xbf16>
    %cst_214 = arith.constant dense<0.000000e+00> : vector<8x896xf32>
    %174 = tpu.matmul %172, %173, %cst_214 {dimension_numbers = #tpu.dot_dimension_numbers<[1], [0], [0], [1], [0, 0, 1, 1], [], []>} : vector<8x200xbf16>, vector<200x896xbf16>, vector<8x896xf32> -> vector<8x896xf32>
    %175 = vector.extract_strided_slice %174 {offsets = [0, 0], sizes = [8, 448], strides = [1, 1]} : vector<8x896xf32> to vector<8x448xf32>
    %c0_215 = arith.constant 0 : index
    %c0_216 = arith.constant 0 : index
    %c0_217 = arith.constant 0 : index
    %176 = vector.load %arg3[%c0_215, %c0_216, %c0_217] : memref<2x8x448xf32, #tpu.memory_space<vmem>>, vector<1x8x448xf32>
    %177 = vector.shape_cast %176 : vector<1x8x448xf32> to vector<8x448xf32>
    %178 = vector.shape_cast %175 : vector<8x448xf32> to vector<1x8x448xf32>
    tpu.vector_store %arg3[%c0_215, %c0_216, %c0_217], %178 {strides = array<i32>} : memref<2x8x448xf32, #tpu.memory_space<vmem>>, vector<1x8x448xf32>,
    %179 = vector.extract_strided_slice %174 {offsets = [0, 448], sizes = [8, 448], strides = [1, 1]} : vector<8x896xf32> to vector<8x448xf32>
    %c1_218 = arith.constant 1 : index
    %c0_219 = arith.constant 0 : index
    %c0_220 = arith.constant 0 : index
    %180 = vector.load %arg3[%c1_218, %c0_219, %c0_220] : memref<2x8x448xf32, #tpu.memory_space<vmem>>, vector<1x8x448xf32>
    %181 = vector.shape_cast %180 : vector<1x8x448xf32> to vector<8x448xf32>
    %182 = vector.shape_cast %179 : vector<8x448xf32> to vector<1x8x448xf32>
    tpu.vector_store %arg3[%c1_218, %c0_219, %c0_220], %182 {strides = array<i32>} : memref<2x8x448xf32, #tpu.memory_space<vmem>>, vector<1x8x448xf32>,
    return
  }
  func.func @transform_0(%arg0: i32) -> (i32, i32, i32) {
    %c0_i32 = arith.constant 0 : i32
    %c0_i32_0 = arith.constant 0 : i32
    %c0_i32_1 = arith.constant 0 : i32
    return %arg0, %c0_i32, %c0_i32_0 : i32, i32, i32
  }
  func.func @transform_1(%arg0: i32) -> (i32, i32) {
    %c0_i32 = arith.constant 0 : i32
    %c0_i32_0 = arith.constant 0 : i32
    %c0_i32_1 = arith.constant 0 : i32
    return %c0_i32, %c0_i32_0 : i32, i32
  }
  func.func @transform_2(%arg0: i32) -> (i32, i32, i32) {
    %c0_i32 = arith.constant 0 : i32
    %c0_i32_0 = arith.constant 0 : i32
    %c0_i32_1 = arith.constant 0 : i32
    return %arg0, %c0_i32, %c0_i32_0 : i32, i32, i32
  }
}

</mosaic_0001>

<llo_original>
// kernel: tpu_custom_call.1
$region0: #{tpu_custom_call.1}
  #allocation0 [shape = 'u32[]', space=smem, size = 0x4, offset = 0x4, fixed_abs, tag = 'smem constant byte address 0x4 - core index']
  #allocation1 [shape = 'u32[72,128]{1,0:T(1,128)}', space=vmem, size = 0x9000, scoped, tag = 'internal scratch']
  #allocation2 [shape = 'bf16[8,812]{1,0:T(8,128)(2,1)}', space=vmem, size = 0x3800, scoped, tag = 'scratch operand']
  #allocation3 [shape = 'bf16[200,896]{1,0:T(8,128)(2,1)}', space=vmem, size = 0x57800, scoped, tag = 'scratch operand']
  %s0 = inlined_call_operand.hbm [shape: f32[2,8,256], index: 0, kind: input, shape index: {}]
  %s1 = inlined_call_operand.hbm [shape: bf16[8,200], index: 1, kind: input, shape index: {}]
  %s2 = inlined_call_operand.hbm [shape: f32[2,8,448], index: 2, kind: output, shape index: {}]
  %s3 = sld [smem:[#allocation0]]
  $region26: #{tpu_custom_call.1} parent=0
    _
  %s5 = ssub.s32 1, %s3
  %s6 = scalar_select 0, %s5, %s3
  $region1: #{tpu_custom_call.1} parent=0
    #allocation4 [shape = 'u8[16384]{0}', space=vmem, size = 0x4000, scoped, tag = 'input window, operand 0, single buffered']
    #allocation5 [shape = 's32[1]{0}', space=sflag, size = 0x4, scoped, tag = 'scoped memory for tpu_custom_call.1']
    #allocation6 [shape = 's32[1]{0}', space=sflag, size = 0x4, scoped, tag = 'scoped memory for tpu_custom_call.1']
    #allocation7 [shape = 'u8[4096]{0}', space=vmem, size = 0x1000, scoped, tag = 'input window, operand 1, single buffered']
    #allocation8 [shape = 's32[1]{0}', space=sflag, size = 0x4, scoped, tag = 'scoped memory for tpu_custom_call.1']
    #allocation9 [shape = 'u8[32768]{0}', space=vmem, size = 0x8000, scoped, tag = 'output window, operand 0, single buffered']
    %7 = vsyncpa [#allocation5], 0
    %8 = vsyncpa [#allocation8], 0
    %9 = vsyncpa [#allocation6], 0
    // Predicated region
    $region2: #{tpu_custom_call.1} parent=1 // pred_check
      _
    $region3: #{tpu_custom_call.1} parent=1 // pred_check_branch
      %11 = sbr.rel (0) target = $region5
    $region4: #{tpu_custom_call.1} parent=1 // pred_region
      %13 = vsyncadd [#allocation5], 0
      %s14 = sshll.u32 %s0, 4
      %s15 = int_to_ptr.hbm [resolvable:$true] %s14
      %s16 = sshll.u32 [#allocation4], 4
      %s17 = int_to_ptr.vmem [resolvable:$true] %s16
      %22 = dma.hbm_to_vmem [thread:$0]  %s15, 512, %s17, [#allocation5], 256, 256, 16
    $region5: #{tpu_custom_call.1} parent=1 // pred_fallthru
      _
    // Predicated region
    $region6: #{tpu_custom_call.1} parent=1 // pred_check
      _
    $region7: #{tpu_custom_call.1} parent=1 // pred_check_branch
      %24 = sbr.rel (0) target = $region9
    $region8: #{tpu_custom_call.1} parent=1 // pred_region
      %26 = vsyncadd [#allocation8], 0
      %s28 = sshll.u32 %s1, 4
      %s29 = int_to_ptr.hbm [resolvable:$true] %s28
      %s30 = sshll.u32 [#allocation7], 4
      %s31 = int_to_ptr.vmem [resolvable:$true] %s30
      %33 = dma.hbm_to_vmem [thread:$0]  %s29, 128, %s31, [#allocation8]
    $region9: #{tpu_custom_call.1} parent=1 // pred_fallthru
      _
    // Predicated region
    $region10: #{tpu_custom_call.1} parent=1 // pred_check
      _
    $region11: #{tpu_custom_call.1} parent=1 // pred_check_branch
      %35 = sbr.rel (0) target = $region13
    $region12: #{tpu_custom_call.1} parent=1 // pred_region
      %37 = dma.done [#allocation5], 512
    $region13: #{tpu_custom_call.1} parent=1 // pred_fallthru
      _
    // Predicated region
    $region14: #{tpu_custom_call.1} parent=1 // pred_check
      _
    $region15: #{tpu_custom_call.1} parent=1 // pred_check_branch
      %39 = sbr.rel (0) target = $region17
    $region16: #{tpu_custom_call.1} parent=1 // pred_region
      %41 = dma.done [#allocation8], 128
    $region17: #{tpu_custom_call.1} parent=1 // pred_fallthru
      _
    %43 = vst [vmem:[#allocation2] sm:$0xff] 0
    %44 = vst [vmem:[#allocation2 + $0x8] sm:$0xff] 0
    %45 = vst [vmem:[#allocation2 + $0x10] sm:$0xff] 0
    %vm46 = vcmask 355328
    %47 = vst.msk [vmem:[#allocation2 + $0x18] sm:$0xf] %vm46, 0
    %v48 = vld [vmem:[#allocation4] sm:$0xff]
    %v49 = vld [vmem:[#allocation4 + $0x8] sm:$0xff]
    %v50 = vpack.c.bf16 %v49, %v48
    %52 = vrot.lane.b32.xlu0 %v50, 46
    %v53 = vpop.permute.xlu0 %52
    %vm55 = vcmask 503152
    %56 = vst.msk [vmem:[#allocation2 + $0x4] sm:$0xf] %vm55, %v53
    %57 = vrot.lane.b32.xlu0 %v50, 58
    %v58 = vpop.permute.xlu0 %57
    %vm60 = vcmask 732752
    %61 = vst.msk [vmem:[#allocation2 + $0x4] sm:$0xf] %vm60, %v58
    %62 = vrot.lane.b32.xlu0 %v50, 70
    %v63 = vpop.permute.xlu0 %62
    %vm65 = vcmask 962352
    %66 = vst.msk [vmem:[#allocation2 + $0x4] sm:$0xf] %vm65, %v63
    %67 = vrot.lane.b32.xlu0 %v50, 82
    %v68 = vpop.permute.xlu0 %67
    %vm70 = vcmask 142352
    %71 = vst.msk [vmem:[#allocation2 + $0x8] sm:$0xf] %vm70, %v68
    %72 = vrot.lane.b32.xlu0 %v50, 94
    %v73 = vpop.permute.xlu0 %72
    %vm75 = vcmask 371952
    %76 = vst.msk [vmem:[#allocation2 + $0x8] sm:$0xf] %vm75, %v73
    %77 = vrot.lane.b32.xlu0 %v50, 106
    %v78 = vpop.permute.xlu0 %77
    %vm80 = vcmask 601552
    %81 = vst.msk [vmem:[#allocation2 + $0x8] sm:$0xf] %vm80, %v78
    %82 = vrot.lane.b32.xlu0 %v50, 118
    %v83 = vpop.permute.xlu0 %82
    %vm85 = vcmask 831152
    %86 = vst.msk [vmem:[#allocation2 + $0x8] sm:$0xf] %vm85, %v83
    %87 = vrot.lane.b32.xlu0 %v50, 2
    %v88 = vpop.permute.xlu0 %87
    %v89 = vrot.slane %v88, 4
    %vm90 = vcmask 15360
    %v91 = vsel %vm90, %v89, %v88
    %vm93 = vcmask 1044368
    %vm94 = vcmask 15364
    %vm95 = vmor %vm94, %vm93
    %96 = vst.msk [vmem:[#allocation2 + $0x8] sm:$0xff] %vm95, %v91
    %97 = vrot.lane.b32.xlu0 %v50, 14
    %v98 = vpop.permute.xlu0 %97
    %v99 = vrot.slane %v98, 4
    %vm100 = vcmask 113664
    %v101 = vsel %vm100, %v98, %v99
    %vm103 = vcmask 240752
    %104 = vst.msk [vmem:[#allocation2 + $0xc] sm:$0xf] %vm103, %v101
    %105 = vrot.lane.b32.xlu0 %v50, 26
    %v106 = vpop.permute.xlu0 %105
    %v107 = vrot.slane %v106, 4
    %vm108 = vcmask 211968
    %v109 = vsel %vm108, %v106, %v107
    %vm111 = vcmask 470352
    %112 = vst.msk [vmem:[#allocation2 + $0xc] sm:$0xf] %vm111, %v109
    %113 = vrot.lane.b32.xlu0 %v50, 38
    %v114 = vpop.permute.xlu0 %113
    %v115 = vrot.slane %v114, 4
    %vm116 = vcmask 310272
    %v117 = vsel %vm116, %v114, %v115
    %vm119 = vcmask 699952
    %120 = vst.msk [vmem:[#allocation2 + $0xc] sm:$0xf] %vm119, %v117
    %121 = vrot.lane.b32.xlu0 %v50, 50
    %v122 = vpop.permute.xlu0 %121
    %v123 = vrot.slane %v122, 4
    %vm124 = vcmask 408576
    %v125 = vsel %vm124, %v122, %v123
    %vm127 = vcmask 929552
    %128 = vst.msk [vmem:[#allocation2 + $0xc] sm:$0xf] %vm127, %v125
    %129 = vrot.lane.b32.xlu0 %v50, 62
    %v130 = vpop.permute.xlu0 %129
    %v131 = vrot.slane %v130, 4
    %vm132 = vcmask 506880
    %v133 = vsel %vm132, %v130, %v131
    %vm135 = vcmask 1044464
    %vm136 = vcmask 113668
    %vm137 = vmor %vm136, %vm135
    %138 = vst.msk [vmem:[#allocation2 + $0xc] sm:$0xff] %vm137, %v133
    %139 = vrot.lane.b32.xlu0 %v50, 74
    %v140 = vpop.permute.xlu0 %139
    %v141 = vrot.slane %v140, 4
    %vm143 = vcmask 339152
    %144 = vst.msk [vmem:[#allocation2 + $0x10] sm:$0xf] %vm143, %v141
    %145 = vrot.lane.b32.xlu0 %v50, 86
    %v146 = vpop.permute.xlu0 %145
    %v147 = vrot.slane %v146, 4
    %vm149 = vcmask 568752
    %150 = vst.msk [vmem:[#allocation2 + $0x10] sm:$0xf] %vm149, %v147
    %151 = vrot.lane.b32.xlu0 %v50, 98
    %v152 = vpop.permute.xlu0 %151
    %v153 = vrot.slane %v152, 4
    %vm155 = vcmask 798352
    %156 = vst.msk [vmem:[#allocation2 + $0x10] sm:$0xf] %vm155, %v153
    %v157 = vld [vmem:[#allocation2] sm:$0xff]
    %v158 = vld [vmem:[#allocation2 + $0x8] sm:$0xff]
    %v159 = vld [vmem:[#allocation2 + $0x10] sm:$0xf]
    %163 = vrot.lane.b32.xlu0 %v157, 41
    %v164 = vpop.permute.xlu0 %163
    %165 = vrot.lane.b32.xlu0 %v158, 41
    %v166 = vpop.permute.xlu0 %165
    %167 = vrot.lane.b32.xlu0 %v159, 41
    %v168 = vpop.permute.xlu0 %167
    %v169 = vrot.slane %v164, 4
    %v170 = vrot.slane %v166, 4
    %v171 = vrot.slane %v168, 4
    %vm172 = vcmask 1043456
    %v173 = vsel %vm172, %v169, %v170
    %vm174 = vcmask 334848
    %v175 = vsel %vm174, %v164, %v173
    %v176 = vsel %vm172, %v170, %v171
    %v177 = vsel %vm174, %v166, %v176
    %180 = vst [vmem:[#allocation3] sm:$0xff] %v175
    %vm181 = vcmask 1043456
    %vm182 = vcmask 523268
    %vm183 = vmor %vm182, %vm181
    %184 = vst.msk [vmem:[#allocation3 + $0x8] sm:$0xff] %vm183, %v177
    %v185 = vld [vmem:[#allocation2] sm:$0xff]
    %v186 = vld [vmem:[#allocation2 + $0x8] sm:$0xff]
    %v187 = vld [vmem:[#allocation2 + $0x10] sm:$0xf]
    %191 = vrot.lane.b32.xlu0 %v185, 38
    %v192 = vpop.permute.xlu0 %191
    %193 = vrot.lane.b32.xlu0 %v186, 38
    %v194 = vpop.permute.xlu0 %193
    %195 = vrot.lane.b32.xlu0 %v187, 38
    %v196 = vpop.permute.xlu0 %195
    %v197 = vrot.slane %v192, 4
    %v198 = vrot.slane %v194, 4
    %v199 = vrot.slane %v196, 4
    %v200 = vsel %vm172, %v197, %v198
    %v201 = vsel %vm116, %v192, %v200
    %v202 = vsel %vm172, %v198, %v199
    %v203 = vsel %vm116, %v194, %v202
    %206 = vst [vmem:[#allocation3 + $0x1c] sm:$0xff] %v201
    %207 = vst.msk [vmem:[#allocation3 + $0x24] sm:$0xff] %vm183, %v203
    %v208 = vld [vmem:[#allocation2] sm:$0xff]
    %v209 = vld [vmem:[#allocation2 + $0x8] sm:$0xff]
    %v210 = vld [vmem:[#allocation2 + $0x10] sm:$0xf]
    %214 = vrot.lane.b32.xlu0 %v208, 35
    %v215 = vpop.permute.xlu0 %214
    %216 = vrot.lane.b32.xlu0 %v209, 35
    %v217 = vpop.permute.xlu0 %216
    %218 = vrot.lane.b32.xlu0 %v210, 35
    %v219 = vpop.permute.xlu0 %218
    %v220 = vrot.slane %v215, 4
    %v221 = vrot.slane %v217, 4
    %v222 = vrot.slane %v219, 4
    %v223 = vsel %vm172, %v220, %v221
    %vm224 = vcmask 285696
    %v225 = vsel %vm224, %v215, %v223
    %v226 = vsel %vm172, %v221, %v222
    %v227 = vsel %vm224, %v217, %v226
    %230 = vst [vmem:[#allocation3 + $0x38] sm:$0xff] %v225
    %231 = vst.msk [vmem:[#allocation3 + $0x40] sm:$0xff] %vm183, %v227
    %v232 = vld [vmem:[#allocation2 + $0x4] sm:$0xff]
    %v233 = vld [vmem:[#allocation2 + $0xc] sm:$0xff]
    %236 = vrot.lane.b32.xlu0 %v232, 85
    %v237 = vpop.permute.xlu0 %236
    %238 = vrot.lane.b32.xlu0 %v233, 85
    %v239 = vpop.permute.xlu0 %238
    %v240 = vrot.slane %v237, 4
    %v241 = vrot.slane %v239, 4
    %v242 = vsel %vm172, %v240, %v241
    %vm243 = vcmask 695296
    %v244 = vsel %vm243, %v237, %v242
    %v245 = vsel %vm243, %v239, %v241
    %248 = vst [vmem:[#allocation3 + $0x54] sm:$0xff] %v244
    %249 = vst.msk [vmem:[#allocation3 + $0x5c] sm:$0xff] %vm183, %v245
    %v250 = vld [vmem:[#allocation2 + $0x4] sm:$0xff]
    %v251 = vld [vmem:[#allocation2 + $0xc] sm:$0xff]
    %254 = vrot.lane.b32.xlu0 %v250, 82
    %v255 = vpop.permute.xlu0 %254
    %256 = vrot.lane.b32.xlu0 %v251, 82
    %v257 = vpop.permute.xlu0 %256
    %v258 = vrot.slane %v255, 4
    %v259 = vrot.slane %v257, 4
    %v260 = vsel %vm172, %v258, %v259
    %vm261 = vcmask 670720
    %v262 = vsel %vm261, %v255, %v260
    %v263 = vsel %vm261, %v257, %v259
    %266 = vst [vmem:[#allocation3 + $0x70] sm:$0xff] %v262
    %267 = vst.msk [vmem:[#allocation3 + $0x78] sm:$0xff] %vm183, %v263
    %v268 = vld [vmem:[#allocation2 + $0x4] sm:$0xff]
    %v269 = vld [vmem:[#allocation2 + $0xc] sm:$0xff]
    %272 = vrot.lane.b32.xlu0 %v268, 79
    %v273 = vpop.permute.xlu0 %272
    %274 = vrot.lane.b32.xlu0 %v269, 79
    %v275 = vpop.permute.xlu0 %274
    %v276 = vrot.slane %v273, 4
    %v277 = vrot.slane %v275, 4
    %v278 = vsel %vm172, %v276, %v277
    %vm279 = vcmask 646144
    %v280 = vsel %vm279, %v273, %v278
    %v281 = vsel %vm279, %v275, %v277
    %284 = vst [vmem:[#allocation3 + $0x8c] sm:$0xff] %v280
    %285 = vst.msk [vmem:[#allocation3 + $0x94] sm:$0xff] %vm183, %v281
    %v286 = vld [vmem:[#allocation2 + $0x4] sm:$0xff]
    %v287 = vld [vmem:[#allocation2 + $0xc] sm:$0xff]
    %v288 = vld [vmem:[#allocation2 + $0x14] sm:$0xf]
    %292 = vrot.lane.b32.xlu0 %v286, 1
    %v293 = vpop.permute.xlu0 %292
    %294 = vrot.lane.b32.xlu0 %v287, 1
    %v295 = vpop.permute.xlu0 %294
    %296 = vrot.lane.b32.xlu0 %v288, 1
    %v297 = vpop.permute.xlu0 %296
    %v298 = vrot.slane %v293, 4
    %v299 = vrot.slane %v295, 4
    %v300 = vrot.slane %v297, 4
    %v301 = vsel %vm172, %v298, %v299
    %vm302 = vcmask 7168
    %v303 = vsel %vm302, %v293, %v301
    %v304 = vsel %vm172, %v299, %v300
    %v305 = vsel %vm302, %v295, %v304
    %308 = vst [vmem:[#allocation3 + $0xa8] sm:$0xff] %v303
    %309 = vst.msk [vmem:[#allocation3 + $0xb0] sm:$0xff] %vm183, %v305
    %v310 = vld [vmem:[#allocation2 + $0x8] sm:$0xff]
    %v311 = vld [vmem:[#allocation2 + $0x10] sm:$0xff]
    %314 = vrot.lane.b32.xlu0 %v310, 126
    %v315 = vpop.permute.xlu0 %314
    %316 = vrot.lane.b32.xlu0 %v311, 126
    %v317 = vpop.permute.xlu0 %316
    %v318 = vrot.slane %v315, 4
    %v319 = vrot.slane %v317, 4
    %v320 = vsel %vm172, %v318, %v319
    %vm321 = vcmask 1031168
    %v322 = vsel %vm321, %v315, %v320
    %v323 = vsel %vm321, %v317, %v319
    %326 = vst [vmem:[#allocation3 + $0xc4] sm:$0xff] %v322
    %327 = vst.msk [vmem:[#allocation3 + $0xcc] sm:$0xff] %vm183, %v323
    %v328 = vld [vmem:[#allocation2 + $0x8] sm:$0xff]
    %v329 = vld [vmem:[#allocation2 + $0x10] sm:$0xff]
    %332 = vrot.lane.b32.xlu0 %v328, 123
    %v333 = vpop.permute.xlu0 %332
    %334 = vrot.lane.b32.xlu0 %v329, 123
    %v335 = vpop.permute.xlu0 %334
    %v336 = vrot.slane %v333, 4
    %v337 = vrot.slane %v335, 4
    %v338 = vsel %vm172, %v336, %v337
    %vm339 = vcmask 1006592
    %v340 = vsel %vm339, %v333, %v338
    %v341 = vsel %vm339, %v335, %v337
    %344 = vst [vmem:[#allocation3 + $0xe0] sm:$0xff] %v340
    %345 = vst.msk [vmem:[#allocation3 + $0xe8] sm:$0xff] %vm183, %v341
    %v346 = vld [vmem:[#allocation2 + $0x4] sm:$0xff]
    %v347 = vld [vmem:[#allocation2 + $0xc] sm:$0xff]
    %350 = vrot.lane.b32.xlu0 %v346, 111
    %v351 = vpop.permute.xlu0 %350
    %352 = vrot.lane.b32.xlu0 %v347, 111
    %v353 = vpop.permute.xlu0 %352
    %v354 = vrot.slane %v351, 4
    %v355 = vrot.slane %v353, 4
    %v356 = vsel %vm172, %v354, %v355
    %vm357 = vcmask 908288
    %v358 = vsel %vm357, %v351, %v356
    %v359 = vsel %vm357, %v353, %v355
    %362 = vst [vmem:[#allocation3 + $0xfc] sm:$0xff] %v358
    %363 = vst.msk [vmem:[#allocation3 + $0x104] sm:$0xff] %vm183, %v359
    %v364 = vld [vmem:[#allocation2 + $0x4] sm:$0xff]
    %v365 = vld [vmem:[#allocation2 + $0xc] sm:$0xff]
    %368 = vrot.lane.b32.xlu0 %v364, 110
    %v369 = vpop.permute.xlu0 %368
    %370 = vrot.lane.b32.xlu0 %v365, 110
    %v371 = vpop.permute.xlu0 %370
    %v372 = vrot.slane %v369, 4
    %v373 = vrot.slane %v371, 4
    %v374 = vsel %vm172, %v372, %v373
    %vm375 = vcmask 900096
    %v376 = vsel %vm375, %v369, %v374
    %v377 = vsel %vm375, %v371, %v373
    %380 = vst [vmem:[#allocation3 + $0x118] sm:$0xff] %v376
    %381 = vst.msk [vmem:[#allocation3 + $0x120] sm:$0xff] %vm183, %v377
    %v382 = vld [vmem:[#allocation2 + $0x4] sm:$0xff]
    %v383 = vld [vmem:[#allocation2 + $0xc] sm:$0xff]
    %386 = vrot.lane.b32.xlu0 %v382, 109
    %v387 = vpop.permute.xlu0 %386
    %388 = vrot.lane.b32.xlu0 %v383, 109
    %v389 = vpop.permute.xlu0 %388
    %v390 = vrot.slane %v387, 4
    %v391 = vrot.slane %v389, 4
    %v392 = vsel %vm172, %v390, %v391
    %vm393 = vcmask 891904
    %v394 = vsel %vm393, %v387, %v392
    %v395 = vsel %vm393, %v389, %v391
    %398 = vst [vmem:[#allocation3 + $0x134] sm:$0xff] %v394
    %399 = vst.msk [vmem:[#allocation3 + $0x13c] sm:$0xff] %vm183, %v395
    %v400 = vld [vmem:[#allocation2 + $0x4] sm:$0xff]
    %v401 = vld [vmem:[#allocation2 + $0xc] sm:$0xff]
    %404 = vrot.lane.b32.xlu0 %v400, 83
    %v405 = vpop.permute.xlu0 %404
    %406 = vrot.lane.b32.xlu0 %v401, 83
    %v407 = vpop.permute.xlu0 %406
    %v408 = vrot.slane %v405, 4
    %v409 = vrot.slane %v407, 4
    %v410 = vsel %vm172, %v408, %v409
    %vm411 = vcmask 678912
    %v412 = vsel %vm411, %v405, %v410
    %v413 = vsel %vm411, %v407, %v409
    %416 = vst [vmem:[#allocation3 + $0x150] sm:$0xff] %v412
    %417 = vst.msk [vmem:[#allocation3 + $0x158] sm:$0xff] %vm183, %v413
    %v418 = vld [vmem:[#allocation2 + $0x4] sm:$0xff]
    %v419 = vld [vmem:[#allocation2 + $0xc] sm:$0xff]
    %422 = vrot.lane.b32.xlu0 %v418, 81
    %v423 = vpop.permute.xlu0 %422
    %424 = vrot.lane.b32.xlu0 %v419, 81
    %v425 = vpop.permute.xlu0 %424
    %v426 = vrot.slane %v423, 4
    %v427 = vrot.slane %v425, 4
    %v428 = vsel %vm172, %v426, %v427
    %vm429 = vcmask 662528
    %v430 = vsel %vm429, %v423, %v428
    %v431 = vsel %vm429, %v425, %v427
    %434 = vst [vmem:[#allocation3 + $0x16c] sm:$0xff] %v430
    %435 = vst.msk [vmem:[#allocation3 + $0x174] sm:$0xff] %vm183, %v431
    %v436 = vld [vmem:[#allocation2 + $0x4] sm:$0xff]
    %v437 = vld [vmem:[#allocation2 + $0xc] sm:$0xff]
    %v438 = vld [vmem:[#allocation2 + $0x14] sm:$0xf]
    %442 = vrot.lane.b32.xlu0 %v436, 55
    %v443 = vpop.permute.xlu0 %442
    %444 = vrot.lane.b32.xlu0 %v437, 55
    %v445 = vpop.permute.xlu0 %444
    %446 = vrot.lane.b32.xlu0 %v438, 55
    %v447 = vpop.permute.xlu0 %446
    %v448 = vrot.slane %v443, 4
    %v449 = vrot.slane %v445, 4
    %v450 = vrot.slane %v447, 4
    %v451 = vsel %vm172, %v448, %v449
    %vm452 = vcmask 449536
    %v453 = vsel %vm452, %v443, %v451
    %v454 = vsel %vm172, %v449, %v450
    %v455 = vsel %vm452, %v445, %v454
    %458 = vst [vmem:[#allocation3 + $0x188] sm:$0xff] %v453
    %459 = vst.msk [vmem:[#allocation3 + $0x190] sm:$0xff] %vm183, %v455
    %v460 = vld [vmem:[#allocation2 + $0x4] sm:$0xff]
    %v461 = vld [vmem:[#allocation2 + $0xc] sm:$0xff]
    %v462 = vld [vmem:[#allocation2 + $0x14] sm:$0xf]
    %466 = vrot.lane.b32.xlu0 %v460, 54
    %v467 = vpop.permute.xlu0 %466
    %468 = vrot.lane.b32.xlu0 %v461, 54
    %v469 = vpop.permute.xlu0 %468
    %470 = vrot.lane.b32.xlu0 %v462, 54
    %v471 = vpop.permute.xlu0 %470
    %v472 = vrot.slane %v467, 4
    %v473 = vrot.slane %v469, 4
    %v474 = vrot.slane %v471, 4
    %v475 = vsel %vm172, %v472, %v473
    %vm476 = vcmask 441344
    %v477 = vsel %vm476, %v467, %v475
    %v478 = vsel %vm172, %v473, %v474
    %v479 = vsel %vm476, %v469, %v478
    %482 = vst [vmem:[#allocation3 + $0x1a4] sm:$0xff] %v477
    %483 = vst.msk [vmem:[#allocation3 + $0x1ac] sm:$0xff] %vm183, %v479
    %v484 = vld [vmem:[#allocation2 + $0x4] sm:$0xff]
    %v485 = vld [vmem:[#allocation2 + $0xc] sm:$0xff]
    %v486 = vld [vmem:[#allocation2 + $0x14] sm:$0xf]
    %490 = vrot.lane.b32.xlu0 %v484, 53
    %v491 = vpop.permute.xlu0 %490
    %492 = vrot.lane.b32.xlu0 %v485, 53
    %v493 = vpop.permute.xlu0 %492
    %494 = vrot.lane.b32.xlu0 %v486, 53
    %v495 = vpop.permute.xlu0 %494
    %v496 = vrot.slane %v491, 4
    %v497 = vrot.slane %v493, 4
    %v498 = vrot.slane %v495, 4
    %v499 = vsel %vm172, %v496, %v497
    %vm500 = vcmask 433152
    %v501 = vsel %vm500, %v491, %v499
    %v502 = vsel %vm172, %v497, %v498
    %v503 = vsel %vm500, %v493, %v502
    %506 = vst [vmem:[#allocation3 + $0x1c0] sm:$0xff] %v501
    %507 = vst.msk [vmem:[#allocation3 + $0x1c8] sm:$0xff] %vm183, %v503
    %v508 = vld [vmem:[#allocation2] sm:$0xff]
    %v509 = vld [vmem:[#allocation2 + $0x8] sm:$0xff]
    %510 = vst [vmem:[#allocation3 + $0x1dc] sm:$0xff] %v508
    %511 = vst.msk [vmem:[#allocation3 + $0x1e4] sm:$0xff] %vm183, %v509
    %v512 = vld [vmem:[#allocation2] sm:$0xff]
    %v513 = vld [vmem:[#allocation2 + $0x8] sm:$0xff]
    %516 = vrot.lane.b32.xlu0 %v512, 122
    %v517 = vpop.permute.xlu0 %516
    %518 = vrot.lane.b32.xlu0 %v513, 122
    %v519 = vpop.permute.xlu0 %518
    %v520 = vrot.slane %v517, 4
    %v521 = vrot.slane %v519, 4
    %v522 = vsel %vm172, %v520, %v521
    %vm523 = vcmask 998400
    %v524 = vsel %vm523, %v517, %v522
    %v525 = vsel %vm523, %v519, %v521
    %528 = vst [vmem:[#allocation3 + $0x1f8] sm:$0xff] %v524
    %529 = vst.msk [vmem:[#allocation3 + $0x200] sm:$0xff] %vm183, %v525
    %v530 = vld [vmem:[#allocation2] sm:$0xff]
    %v531 = vld [vmem:[#allocation2 + $0x8] sm:$0xff]
    %534 = vrot.lane.b32.xlu0 %v530, 116
    %v535 = vpop.permute.xlu0 %534
    %536 = vrot.lane.b32.xlu0 %v531, 116
    %v537 = vpop.permute.xlu0 %536
    %v538 = vrot.slane %v535, 4
    %v539 = vrot.slane %v537, 4
    %v540 = vsel %vm172, %v538, %v539
    %vm541 = vcmask 949248
    %v542 = vsel %vm541, %v535, %v540
    %v543 = vsel %vm541, %v537, %v539
    %546 = vst [vmem:[#allocation3 + $0x214] sm:$0xff] %v542
    %547 = vst.msk [vmem:[#allocation3 + $0x21c] sm:$0xff] %vm183, %v543
    %v548 = vld [vmem:[#allocation2 + $0x4] sm:$0xff]
    %v549 = vld [vmem:[#allocation2 + $0xc] sm:$0xff]
    %552 = vrot.lane.b32.xlu0 %v548, 88
    %v553 = vpop.permute.xlu0 %552
    %554 = vrot.lane.b32.xlu0 %v549, 88
    %v555 = vpop.permute.xlu0 %554
    %v556 = vrot.slane %v553, 4
    %v557 = vrot.slane %v555, 4
    %v558 = vsel %vm172, %v556, %v557
    %vm559 = vcmask 719872
    %v560 = vsel %vm559, %v553, %v558
    %v561 = vsel %vm559, %v555, %v557
    %564 = vst [vmem:[#allocation3 + $0x230] sm:$0xff] %v560
    %565 = vst.msk [vmem:[#allocation3 + $0x238] sm:$0xff] %vm183, %v561
    %v566 = vld [vmem:[#allocation2 + $0x4] sm:$0xff]
    %v567 = vld [vmem:[#allocation2 + $0xc] sm:$0xff]
    %570 = vrot.lane.b32.xlu0 %v566, 76
    %v571 = vpop.permute.xlu0 %570
    %572 = vrot.lane.b32.xlu0 %v567, 76
    %v573 = vpop.permute.xlu0 %572
    %v574 = vrot.slane %v571, 4
    %v575 = vrot.slane %v573, 4
    %v576 = vsel %vm172, %v574, %v575
    %vm577 = vcmask 621568
    %v578 = vsel %vm577, %v571, %v576
    %v579 = vsel %vm577, %v573, %v575
    %582 = vst [vmem:[#allocation3 + $0x24c] sm:$0xff] %v578
    %583 = vst.msk [vmem:[#allocation3 + $0x254] sm:$0xff] %vm183, %v579
    %v584 = vld [vmem:[#allocation2 + $0x8] sm:$0xff]
    %v585 = vld [vmem:[#allocation2 + $0x10] sm:$0xff]
    %v586 = vld [vmem:[#allocation2 + $0x18] sm:$0xf]
    %590 = vrot.lane.b32.xlu0 %v584, 48
    %v591 = vpop.permute.xlu0 %590
    %592 = vrot.lane.b32.xlu0 %v585, 48
    %v593 = vpop.permute.xlu0 %592
    %594 = vrot.lane.b32.xlu0 %v586, 48
    %v595 = vpop.permute.xlu0 %594
    %v596 = vrot.slane %v591, 4
    %v597 = vrot.slane %v593, 4
    %v598 = vrot.slane %v595, 4
    %v599 = vsel %vm172, %v596, %v597
    %vm600 = vcmask 392192
    %v601 = vsel %vm600, %v591, %v599
    %v602 = vsel %vm172, %v597, %v598
    %v603 = vsel %vm600, %v593, %v602
    %606 = vst [vmem:[#allocation3 + $0x268] sm:$0xff] %v601
    %607 = vst.msk [vmem:[#allocation3 + $0x270] sm:$0xff] %vm183, %v603
    %v608 = vld [vmem:[#allocation2 + $0x8] sm:$0xff]
    %v609 = vld [vmem:[#allocation2 + $0x10] sm:$0xff]
    %v610 = vld [vmem:[#allocation2 + $0x18] sm:$0xf]
    %614 = vrot.lane.b32.xlu0 %v608, 42
    %v615 = vpop.permute.xlu0 %614
    %616 = vrot.lane.b32.xlu0 %v609, 42
    %v617 = vpop.permute.xlu0 %616
    %618 = vrot.lane.b32.xlu0 %v610, 42
    %v619 = vpop.permute.xlu0 %618
    %v620 = vrot.slane %v615, 4
    %v621 = vrot.slane %v617, 4
    %v622 = vrot.slane %v619, 4
    %v623 = vsel %vm172, %v620, %v621
    %vm624 = vcmask 343040
    %v625 = vsel %vm624, %v615, %v623
    %v626 = vsel %vm172, %v621, %v622
    %v627 = vsel %vm624, %v617, %v626
    %630 = vst [vmem:[#allocation3 + $0x284] sm:$0xff] %v625
    %631 = vst.msk [vmem:[#allocation3 + $0x28c] sm:$0xff] %vm183, %v627
    %v632 = vld [vmem:[#allocation2 + $0x8] sm:$0xff]
    %v633 = vld [vmem:[#allocation2 + $0x10] sm:$0xff]
    %v634 = vld [vmem:[#allocation2 + $0x18] sm:$0xf]
    %638 = vrot.lane.b32.xlu0 %v632, 36
    %v639 = vpop.permute.xlu0 %638
    %640 = vrot.lane.b32.xlu0 %v633, 36
    %v641 = vpop.permute.xlu0 %640
    %642 = vrot.lane.b32.xlu0 %v634, 36
    %v643 = vpop.permute.xlu0 %642
    %v644 = vrot.slane %v639, 4
    %v645 = vrot.slane %v641, 4
    %v646 = vrot.slane %v643, 4
    %v647 = vsel %vm172, %v644, %v645
    %vm648 = vcmask 293888
    %v649 = vsel %vm648, %v639, %v647
    %v650 = vsel %vm172, %v645, %v646
    %v651 = vsel %vm648, %v641, %v650
    %654 = vst [vmem:[#allocation3 + $0x2a0] sm:$0xff] %v649
    %655 = vst.msk [vmem:[#allocation3 + $0x2a8] sm:$0xff] %vm183, %v651
    %s656 = scalar_lea.vmem [#allocation4], 16
    %v657 = vld [vmem:[%s656] sm:$0xff]
    %v658 = vld [vmem:[%s656 + $0x8] sm:$0xff]
    %v659 = vpack.c.bf16 %v658, %v657
    %661 = vrot.lane.b32.xlu0 %v659, 46
    %v662 = vpop.permute.xlu0 %661
    %664 = vst.msk [vmem:[#allocation2 + $0x4] sm:$0xf] %vm55, %v662
    %665 = vrot.lane.b32.xlu0 %v659, 58
    %v666 = vpop.permute.xlu0 %665
    %668 = vst.msk [vmem:[#allocation2 + $0x4] sm:$0xf] %vm60, %v666
    %669 = vrot.lane.b32.xlu0 %v659, 70
    %v670 = vpop.permute.xlu0 %669
    %672 = vst.msk [vmem:[#allocation2 + $0x4] sm:$0xf] %vm65, %v670
    %673 = vrot.lane.b32.xlu0 %v659, 82
    %v674 = vpop.permute.xlu0 %673
    %676 = vst.msk [vmem:[#allocation2 + $0x8] sm:$0xf] %vm70, %v674
    %677 = vrot.lane.b32.xlu0 %v659, 94
    %v678 = vpop.permute.xlu0 %677
    %680 = vst.msk [vmem:[#allocation2 + $0x8] sm:$0xf] %vm75, %v678
    %681 = vrot.lane.b32.xlu0 %v659, 106
    %v682 = vpop.permute.xlu0 %681
    %684 = vst.msk [vmem:[#allocation2 + $0x8] sm:$0xf] %vm80, %v682
    %685 = vrot.lane.b32.xlu0 %v659, 118
    %v686 = vpop.permute.xlu0 %685
    %688 = vst.msk [vmem:[#allocation2 + $0x8] sm:$0xf] %vm85, %v686
    %689 = vrot.lane.b32.xlu0 %v659, 2
    %v690 = vpop.permute.xlu0 %689
    %v691 = vrot.slane %v690, 4
    %v692 = vsel %vm90, %v691, %v690
    %694 = vst.msk [vmem:[#allocation2 + $0x8] sm:$0xff] %vm95, %v692
    %695 = vrot.lane.b32.xlu0 %v659, 14
    %v696 = vpop.permute.xlu0 %695
    %v697 = vrot.slane %v696, 4
    %v698 = vsel %vm100, %v696, %v697
    %700 = vst.msk [vmem:[#allocation2 + $0xc] sm:$0xf] %vm103, %v698
    %701 = vrot.lane.b32.xlu0 %v659, 26
    %v702 = vpop.permute.xlu0 %701
    %v703 = vrot.slane %v702, 4
    %v704 = vsel %vm108, %v702, %v703
    %706 = vst.msk [vmem:[#allocation2 + $0xc] sm:$0xf] %vm111, %v704
    %707 = vrot.lane.b32.xlu0 %v659, 38
    %v708 = vpop.permute.xlu0 %707
    %v709 = vrot.slane %v708, 4
    %v710 = vsel %vm116, %v708, %v709
    %712 = vst.msk [vmem:[#allocation2 + $0xc] sm:$0xf] %vm119, %v710
    %713 = vrot.lane.b32.xlu0 %v659, 50
    %v714 = vpop.permute.xlu0 %713
    %v715 = vrot.slane %v714, 4
    %v716 = vsel %vm124, %v714, %v715
    %718 = vst.msk [vmem:[#allocation2 + $0xc] sm:$0xf] %vm127, %v716
    %719 = vrot.lane.b32.xlu0 %v659, 62
    %v720 = vpop.permute.xlu0 %719
    %v721 = vrot.slane %v720, 4
    %v722 = vsel %vm132, %v720, %v721
    %724 = vst.msk [vmem:[#allocation2 + $0xc] sm:$0xff] %vm137, %v722
    %725 = vrot.lane.b32.xlu0 %v659, 74
    %v726 = vpop.permute.xlu0 %725
    %v727 = vrot.slane %v726, 4
    %729 = vst.msk [vmem:[#allocation2 + $0x10] sm:$0xf] %vm143, %v727
    %730 = vrot.lane.b32.xlu0 %v659, 86
    %v731 = vpop.permute.xlu0 %730
    %v732 = vrot.slane %v731, 4
    %734 = vst.msk [vmem:[#allocation2 + $0x10] sm:$0xf] %vm149, %v732
    %735 = vrot.lane.b32.xlu0 %v659, 98
    %v736 = vpop.permute.xlu0 %735
    %v737 = vrot.slane %v736, 4
    %739 = vst.msk [vmem:[#allocation2 + $0x10] sm:$0xf] %vm155, %v737
    %v740 = vld [vmem:[#allocation2] sm:$0xff]
    %v741 = vld [vmem:[#allocation2 + $0x8] sm:$0xff]
    %v742 = vld [vmem:[#allocation2 + $0x10] sm:$0xf]
    %746 = vrot.lane.b32.xlu0 %v740, 105
    %v747 = vpop.permute.xlu0 %746
    %748 = vrot.lane.b32.xlu0 %v741, 105
    %v749 = vpop.permute.xlu0 %748
    %750 = vrot.lane.b32.xlu0 %v742, 105
    %v751 = vpop.permute.xlu0 %750
    %v752 = vrot.slane %v747, 4
    %v753 = vrot.slane %v749, 4
    %v754 = vrot.slane %v751, 4
    %v755 = vsel %vm172, %v752, %v753
    %vm756 = vcmask 859136
    %v757 = vsel %vm756, %v747, %v755
    %v758 = vsel %vm172, %v753, %v754
    %v759 = vsel %vm756, %v749, %v758
    %vm762 = vcmask 1043968
    %vm763 = vcmask 1047556
    %vm764 = vmor %vm763, %vm762
    %765 = vst.msk [vmem:[#allocation3 + $0xc] sm:$0xff] %vm764, %v757
    %766 = vst [vmem:[#allocation3 + $0x14] sm:$0xff] %v759
    %v767 = vld [vmem:[#allocation2] sm:$0xff]
    %v768 = vld [vmem:[#allocation2 + $0x8] sm:$0xff]
    %v769 = vld [vmem:[#allocation2 + $0x10] sm:$0xf]
    %773 = vrot.lane.b32.xlu0 %v767, 102
    %v774 = vpop.permute.xlu0 %773
    %775 = vrot.lane.b32.xlu0 %v768, 102
    %v776 = vpop.permute.xlu0 %775
    %777 = vrot.lane.b32.xlu0 %v769, 102
    %v778 = vpop.permute.xlu0 %777
    %v779 = vrot.slane %v774, 4
    %v780 = vrot.slane %v776, 4
    %v781 = vrot.slane %v778, 4
    %v782 = vsel %vm172, %v779, %v780
    %vm783 = vcmask 834560
    %v784 = vsel %vm783, %v774, %v782
    %v785 = vsel %vm172, %v780, %v781
    %v786 = vsel %vm783, %v776, %v785
    %789 = vst.msk [vmem:[#allocation3 + $0x28] sm:$0xff] %vm764, %v784
    %790 = vst [vmem:[#allocation3 + $0x30] sm:$0xff] %v786
    %v791 = vld [vmem:[#allocation2] sm:$0xff]
    %v792 = vld [vmem:[#allocation2 + $0x8] sm:$0xff]
    %v793 = vld [vmem:[#allocation2 + $0x10] sm:$0xf]
    %797 = vrot.lane.b32.xlu0 %v791, 99
    %v798 = vpop.permute.xlu0 %797
    %799 = vrot.lane.b32.xlu0 %v792, 99
    %v800 = vpop.permute.xlu0 %799
    %801 = vrot.lane.b32.xlu0 %v793, 99
    %v802 = vpop.permute.xlu0 %801
    %v803 = vrot.slane %v798, 4
    %v804 = vrot.slane %v800, 4
    %v805 = vrot.slane %v802, 4
    %v806 = vsel %vm172, %v803, %v804
    %vm807 = vcmask 809984
    %v808 = vsel %vm807, %v798, %v806
    %v809 = vsel %vm172, %v804, %v805
    %v810 = vsel %vm807, %v800, %v809
    %813 = vst.msk [vmem:[#allocation3 + $0x44] sm:$0xff] %vm764, %v808
    %814 = vst [vmem:[#allocation3 + $0x4c] sm:$0xff] %v810
    %v815 = vld [vmem:[#allocation2 + $0x4] sm:$0xff]
    %v816 = vld [vmem:[#allocation2 + $0xc] sm:$0xff]
    %819 = vrot.lane.b32.xlu0 %v815, 21
    %v820 = vpop.permute.xlu0 %819
    %821 = vrot.lane.b32.xlu0 %v816, 21
    %v822 = vpop.permute.xlu0 %821
    %v823 = vrot.slane %v820, 4
    %v824 = vrot.slane %v822, 4
    %vm825 = vcmask 171008
    %v826 = vsel %vm825, %v823, %v820
    %v827 = vsel %vm172, %v823, %v824
    %v828 = vsel %vm825, %v827, %v822
    %831 = vst.msk [vmem:[#allocation3 + $0x60] sm:$0xff] %vm764, %v826
    %832 = vst [vmem:[#allocation3 + $0x68] sm:$0xff] %v828
    %v833 = vld [vmem:[#allocation2 + $0x4] sm:$0xff]
    %v834 = vld [vmem:[#allocation2 + $0xc] sm:$0xff]
    %837 = vrot.lane.b32.xlu0 %v833, 18
    %v838 = vpop.permute.xlu0 %837
    %839 = vrot.lane.b32.xlu0 %v834, 18
    %v840 = vpop.permute.xlu0 %839
    %v841 = vrot.slane %v838, 4
    %v842 = vrot.slane %v840, 4
    %vm843 = vcmask 146432
    %v844 = vsel %vm843, %v841, %v838
    %v845 = vsel %vm172, %v841, %v842
    %v846 = vsel %vm843, %v845, %v840
    %849 = vst.msk [vmem:[#allocation3 + $0x7c] sm:$0xff] %vm764, %v844
    %850 = vst [vmem:[#allocation3 + $0x84] sm:$0xff] %v846
    %v851 = vld [vmem:[#allocation2 + $0x4] sm:$0xff]
    %v852 = vld [vmem:[#allocation2 + $0xc] sm:$0xff]
    %855 = vrot.lane.b32.xlu0 %v851, 15
    %v856 = vpop.permute.xlu0 %855
    %857 = vrot.lane.b32.xlu0 %v852, 15
    %v858 = vpop.permute.xlu0 %857
    %v859 = vrot.slane %v856, 4
    %v860 = vrot.slane %v858, 4
    %vm861 = vcmask 121856
    %v862 = vsel %vm861, %v859, %v856
    %v863 = vsel %vm172, %v859, %v860
    %v864 = vsel %vm861, %v863, %v858
    %867 = vst.msk [vmem:[#allocation3 + $0x98] sm:$0xff] %vm764, %v862
    %868 = vst [vmem:[#allocation3 + $0xa0] sm:$0xff] %v864
    %v869 = vld [vmem:[#allocation2 + $0x4] sm:$0xff]
    %v870 = vld [vmem:[#allocation2 + $0xc] sm:$0xff]
    %v871 = vld [vmem:[#allocation2 + $0x14] sm:$0xf]
    %875 = vrot.lane.b32.xlu0 %v869, 65
    %v876 = vpop.permute.xlu0 %875
    %877 = vrot.lane.b32.xlu0 %v870, 65
    %v878 = vpop.permute.xlu0 %877
    %879 = vrot.lane.b32.xlu0 %v871, 65
    %v880 = vpop.permute.xlu0 %879
    %v881 = vrot.slane %v876, 4
    %v882 = vrot.slane %v878, 4
    %v883 = vrot.slane %v880, 4
    %v884 = vsel %vm172, %v881, %v882
    %vm885 = vcmask 531456
    %v886 = vsel %vm885, %v876, %v884
    %v887 = vsel %vm172, %v882, %v883
    %v888 = vsel %vm885, %v878, %v887
    %891 = vst.msk [vmem:[#allocation3 + $0xb4] sm:$0xff] %vm764, %v886
    %892 = vst [vmem:[#allocation3 + $0xbc] sm:$0xff] %v888
    %v893 = vld [vmem:[#allocation2 + $0x8] sm:$0xff]
    %v894 = vld [vmem:[#allocation2 + $0x10] sm:$0xff]
    %897 = vrot.lane.b32.xlu0 %v893, 62
    %v898 = vpop.permute.xlu0 %897
    %899 = vrot.lane.b32.xlu0 %v894, 62
    %v900 = vpop.permute.xlu0 %899
    %v901 = vrot.slane %v898, 4
    %v902 = vrot.slane %v900, 4
    %v903 = vsel %vm132, %v901, %v898
    %v904 = vsel %vm172, %v901, %v902
    %v905 = vsel %vm132, %v904, %v900
    %908 = vst.msk [vmem:[#allocation3 + $0xd0] sm:$0xff] %vm764, %v903
    %909 = vst [vmem:[#allocation3 + $0xd8] sm:$0xff] %v905
    %v910 = vld [vmem:[#allocation2 + $0x8] sm:$0xff]
    %v911 = vld [vmem:[#allocation2 + $0x10] sm:$0xff]
    %914 = vrot.lane.b32.xlu0 %v910, 59
    %v915 = vpop.permute.xlu0 %914
    %916 = vrot.lane.b32.xlu0 %v911, 59
    %v917 = vpop.permute.xlu0 %916
    %v918 = vrot.slane %v915, 4
    %v919 = vrot.slane %v917, 4
    %vm920 = vcmask 482304
    %v921 = vsel %vm920, %v918, %v915
    %v922 = vsel %vm172, %v918, %v919
    %v923 = vsel %vm920, %v922, %v917
    %926 = vst.msk [vmem:[#allocation3 + $0xec] sm:$0xff] %vm764, %v921
    %927 = vst [vmem:[#allocation3 + $0xf4] sm:$0xff] %v923
    %v928 = vld [vmem:[#allocation2 + $0x4] sm:$0xff]
    %v929 = vld [vmem:[#allocation2 + $0xc] sm:$0xff]
    %932 = vrot.lane.b32.xlu0 %v928, 47
    %v933 = vpop.permute.xlu0 %932
    %934 = vrot.lane.b32.xlu0 %v929, 47
    %v935 = vpop.permute.xlu0 %934
    %v936 = vrot.slane %v933, 4
    %v937 = vrot.slane %v935, 4
    %vm938 = vcmask 384000
    %v939 = vsel %vm938, %v936, %v933
    %v940 = vsel %vm172, %v936, %v937
    %v941 = vsel %vm938, %v940, %v935
    %944 = vst.msk [vmem:[#allocation3 + $0x108] sm:$0xff] %vm764, %v939
    %945 = vst [vmem:[#allocation3 + $0x110] sm:$0xff] %v941
    %v946 = vld [vmem:[#allocation2 + $0x4] sm:$0xff]
    %v947 = vld [vmem:[#allocation2 + $0xc] sm:$0xff]
    %950 = vrot.lane.b32.xlu0 %v946, 46
    %v951 = vpop.permute.xlu0 %950
    %952 = vrot.lane.b32.xlu0 %v947, 46
    %v953 = vpop.permute.xlu0 %952
    %v954 = vrot.slane %v951, 4
    %v955 = vrot.slane %v953, 4
    %vm956 = vcmask 375808
    %v957 = vsel %vm956, %v954, %v951
    %v958 = vsel %vm172, %v954, %v955
    %v959 = vsel %vm956, %v958, %v953
    %962 = vst.msk [vmem:[#allocation3 + $0x124] sm:$0xff] %vm764, %v957
    %963 = vst [vmem:[#allocation3 + $0x12c] sm:$0xff] %v959
    %v964 = vld [vmem:[#allocation2 + $0x4] sm:$0xff]
    %v965 = vld [vmem:[#allocation2 + $0xc] sm:$0xff]
    %968 = vrot.lane.b32.xlu0 %v964, 45
    %v969 = vpop.permute.xlu0 %968
    %970 = vrot.lane.b32.xlu0 %v965, 45
    %v971 = vpop.permute.xlu0 %970
    %v972 = vrot.slane %v969, 4
    %v973 = vrot.slane %v971, 4
    %vm974 = vcmask 367616
    %v975 = vsel %vm974, %v972, %v969
    %v976 = vsel %vm172, %v972, %v973
    %v977 = vsel %vm974, %v976, %v971
    %980 = vst.msk [vmem:[#allocation3 + $0x140] sm:$0xff] %vm764, %v975
    %981 = vst [vmem:[#allocation3 + $0x148] sm:$0xff] %v977
    %v982 = vld [vmem:[#allocation2 + $0x4] sm:$0xff]
    %v983 = vld [vmem:[#allocation2 + $0xc] sm:$0xff]
    %986 = vrot.lane.b32.xlu0 %v982, 19
    %v987 = vpop.permute.xlu0 %986
    %988 = vrot.lane.b32.xlu0 %v983, 19
    %v989 = vpop.permute.xlu0 %988
    %v990 = vrot.slane %v987, 4
    %v991 = vrot.slane %v989, 4
    %vm992 = vcmask 154624
    %v993 = vsel %vm992, %v990, %v987
    %v994 = vsel %vm172, %v990, %v991
    %v995 = vsel %vm992, %v994, %v989
    %998 = vst.msk [vmem:[#allocation3 + $0x15c] sm:$0xff] %vm764, %v993
    %999 = vst [vmem:[#allocation3 + $0x164] sm:$0xff] %v995
    %v1000 = vld [vmem:[#allocation2 + $0x4] sm:$0xff]
    %v1001 = vld [vmem:[#allocation2 + $0xc] sm:$0xff]
    %1004 = vrot.lane.b32.xlu0 %v1000, 17
    %v1005 = vpop.permute.xlu0 %1004
    %1006 = vrot.lane.b32.xlu0 %v1001, 17
    %v1007 = vpop.permute.xlu0 %1006
    %v1008 = vrot.slane %v1005, 4
    %v1009 = vrot.slane %v1007, 4
    %vm1010 = vcmask 138240
    %v1011 = vsel %vm1010, %v1008, %v1005
    %v1012 = vsel %vm172, %v1008, %v1009
    %v1013 = vsel %vm1010, %v1012, %v1007
    %1016 = vst.msk [vmem:[#allocation3 + $0x178] sm:$0xff] %vm764, %v1011
    %1017 = vst [vmem:[#allocation3 + $0x180] sm:$0xff] %v1013
    %v1018 = vld [vmem:[#allocation2 + $0x4] sm:$0xff]
    %v1019 = vld [vmem:[#allocation2 + $0xc] sm:$0xff]
    %v1020 = vld [vmem:[#allocation2 + $0x14] sm:$0xf]
    %1024 = vrot.lane.b32.xlu0 %v1018, 119
    %v1025 = vpop.permute.xlu0 %1024
    %1026 = vrot.lane.b32.xlu0 %v1019, 119
    %v1027 = vpop.permute.xlu0 %1026
    %1028 = vrot.lane.b32.xlu0 %v1020, 119
    %v1029 = vpop.permute.xlu0 %1028
    %v1030 = vrot.slane %v1025, 4
    %v1031 = vrot.slane %v1027, 4
    %v1032 = vrot.slane %v1029, 4
    %v1033 = vsel %vm172, %v1030, %v1031
    %vm1034 = vcmask 973824
    %v1035 = vsel %vm1034, %v1025, %v1033
    %v1036 = vsel %vm172, %v1031, %v1032
    %v1037 = vsel %vm1034, %v1027, %v1036
    %1040 = vst.msk [vmem:[#allocation3 + $0x194] sm:$0xff] %vm764, %v1035
    %1041 = vst [vmem:[#allocation3 + $0x19c] sm:$0xff] %v1037
    %v1042 = vld [vmem:[#allocation2 + $0x4] sm:$0xff]
    %v1043 = vld [vmem:[#allocation2 + $0xc] sm:$0xff]
    %v1044 = vld [vmem:[#allocation2 + $0x14] sm:$0xf]
    %1048 = vrot.lane.b32.xlu0 %v1042, 118
    %v1049 = vpop.permute.xlu0 %1048
    %1050 = vrot.lane.b32.xlu0 %v1043, 118
    %v1051 = vpop.permute.xlu0 %1050
    %1052 = vrot.lane.b32.xlu0 %v1044, 118
    %v1053 = vpop.permute.xlu0 %1052
    %v1054 = vrot.slane %v1049, 4
    %v1055 = vrot.slane %v1051, 4
    %v1056 = vrot.slane %v1053, 4
    %v1057 = vsel %vm172, %v1054, %v1055
    %vm1058 = vcmask 965632
    %v1059 = vsel %vm1058, %v1049, %v1057
    %v1060 = vsel %vm172, %v1055, %v1056
    %v1061 = vsel %vm1058, %v1051, %v1060
    %1064 = vst.msk [vmem:[#allocation3 + $0x1b0] sm:$0xff] %vm764, %v1059
    %1065 = vst [vmem:[#allocation3 + $0x1b8] sm:$0xff] %v1061
    %v1066 = vld [vmem:[#allocation2 + $0x4] sm:$0xff]
    %v1067 = vld [vmem:[#allocation2 + $0xc] sm:$0xff]
    %v1068 = vld [vmem:[#allocation2 + $0x14] sm:$0xf]
    %1072 = vrot.lane.b32.xlu0 %v1066, 117
    %v1073 = vpop.permute.xlu0 %1072
    %1074 = vrot.lane.b32.xlu0 %v1067, 117
    %v1075 = vpop.permute.xlu0 %1074
    %1076 = vrot.lane.b32.xlu0 %v1068, 117
    %v1077 = vpop.permute.xlu0 %1076
    %v1078 = vrot.slane %v1073, 4
    %v1079 = vrot.slane %v1075, 4
    %v1080 = vrot.slane %v1077, 4
    %v1081 = vsel %vm172, %v1078, %v1079
    %vm1082 = vcmask 957440
    %v1083 = vsel %vm1082, %v1073, %v1081
    %v1084 = vsel %vm172, %v1079, %v1080
    %v1085 = vsel %vm1082, %v1075, %v1084
    %1088 = vst.msk [vmem:[#allocation3 + $0x1cc] sm:$0xff] %vm764, %v1083
    %1089 = vst [vmem:[#allocation3 + $0x1d4] sm:$0xff] %v1085
    %v1090 = vld [vmem:[#allocation2] sm:$0xff]
    %v1091 = vld [vmem:[#allocation2 + $0x8] sm:$0xff]
    %1094 = vrot.lane.b32.xlu0 %v1090, 64
    %v1095 = vpop.permute.xlu0 %1094
    %1096 = vrot.lane.b32.xlu0 %v1091, 64
    %v1097 = vpop.permute.xlu0 %1096
    %v1098 = vrot.slane %v1095, 4
    %v1099 = vrot.slane %v1097, 4
    %vm1100 = vcmask 523264
    %v1101 = vsel %vm1100, %v1098, %v1095
    %v1102 = vsel %vm172, %v1098, %v1099
    %v1103 = vsel %vm1100, %v1102, %v1097
    %1106 = vst.msk [vmem:[#allocation3 + $0x1e8] sm:$0xff] %vm764, %v1101
    %1107 = vst [vmem:[#allocation3 + $0x1f0] sm:$0xff] %v1103
    %v1108 = vld [vmem:[#allocation2] sm:$0xff]
    %v1109 = vld [vmem:[#allocation2 + $0x8] sm:$0xff]
    %1112 = vrot.lane.b32.xlu0 %v1108, 58
    %v1113 = vpop.permute.xlu0 %1112
    %1114 = vrot.lane.b32.xlu0 %v1109, 58
    %v1115 = vpop.permute.xlu0 %1114
    %v1116 = vrot.slane %v1113, 4
    %v1117 = vrot.slane %v1115, 4
    %vm1118 = vcmask 474112
    %v1119 = vsel %vm1118, %v1116, %v1113
    %v1120 = vsel %vm172, %v1116, %v1117
    %v1121 = vsel %vm1118, %v1120, %v1115
    %1124 = vst.msk [vmem:[#allocation3 + $0x204] sm:$0xff] %vm764, %v1119
    %1125 = vst [vmem:[#allocation3 + $0x20c] sm:$0xff] %v1121
    %v1126 = vld [vmem:[#allocation2] sm:$0xff]
    %v1127 = vld [vmem:[#allocation2 + $0x8] sm:$0xff]
    %1130 = vrot.lane.b32.xlu0 %v1126, 52
    %v1131 = vpop.permute.xlu0 %1130
    %1132 = vrot.lane.b32.xlu0 %v1127, 52
    %v1133 = vpop.permute.xlu0 %1132
    %v1134 = vrot.slane %v1131, 4
    %v1135 = vrot.slane %v1133, 4
    %vm1136 = vcmask 424960
    %v1137 = vsel %vm1136, %v1134, %v1131
    %v1138 = vsel %vm172, %v1134, %v1135
    %v1139 = vsel %vm1136, %v1138, %v1133
    %1142 = vst.msk [vmem:[#allocation3 + $0x220] sm:$0xff] %vm764, %v1137
    %1143 = vst [vmem:[#allocation3 + $0x228] sm:$0xff] %v1139
    %v1144 = vld [vmem:[#allocation2 + $0x4] sm:$0xff]
    %v1145 = vld [vmem:[#allocation2 + $0xc] sm:$0xff]
    %1148 = vrot.lane.b32.xlu0 %v1144, 24
    %v1149 = vpop.permute.xlu0 %1148
    %1150 = vrot.lane.b32.xlu0 %v1145, 24
    %v1151 = vpop.permute.xlu0 %1150
    %v1152 = vrot.slane %v1149, 4
    %v1153 = vrot.slane %v1151, 4
    %vm1154 = vcmask 195584
    %v1155 = vsel %vm1154, %v1152, %v1149
    %v1156 = vsel %vm172, %v1152, %v1153
    %v1157 = vsel %vm1154, %v1156, %v1151
    %1160 = vst.msk [vmem:[#allocation3 + $0x23c] sm:$0xff] %vm764, %v1155
    %1161 = vst [vmem:[#allocation3 + $0x244] sm:$0xff] %v1157
    %v1162 = vld [vmem:[#allocation2 + $0x4] sm:$0xff]
    %v1163 = vld [vmem:[#allocation2 + $0xc] sm:$0xff]
    %1166 = vrot.lane.b32.xlu0 %v1162, 12
    %v1167 = vpop.permute.xlu0 %1166
    %1168 = vrot.lane.b32.xlu0 %v1163, 12
    %v1169 = vpop.permute.xlu0 %1168
    %v1170 = vrot.slane %v1167, 4
    %v1171 = vrot.slane %v1169, 4
    %vm1172 = vcmask 97280
    %v1173 = vsel %vm1172, %v1170, %v1167
    %v1174 = vsel %vm172, %v1170, %v1171
    %v1175 = vsel %vm1172, %v1174, %v1169
    %1178 = vst.msk [vmem:[#allocation3 + $0x258] sm:$0xff] %vm764, %v1173
    %1179 = vst [vmem:[#allocation3 + $0x260] sm:$0xff] %v1175
    %v1180 = vld [vmem:[#allocation2 + $0x8] sm:$0xff]
    %v1181 = vld [vmem:[#allocation2 + $0x10] sm:$0xff]
    %v1182 = vld [vmem:[#allocation2 + $0x18] sm:$0xf]
    %1186 = vrot.lane.b32.xlu0 %v1180, 112
    %v1187 = vpop.permute.xlu0 %1186
    %1188 = vrot.lane.b32.xlu0 %v1181, 112
    %v1189 = vpop.permute.xlu0 %1188
    %1190 = vrot.lane.b32.xlu0 %v1182, 112
    %v1191 = vpop.permute.xlu0 %1190
    %v1192 = vrot.slane %v1187, 4
    %v1193 = vrot.slane %v1189, 4
    %v1194 = vrot.slane %v1191, 4
    %v1195 = vsel %vm172, %v1192, %v1193
    %vm1196 = vcmask 916480
    %v1197 = vsel %vm1196, %v1187, %v1195
    %v1198 = vsel %vm172, %v1193, %v1194
    %v1199 = vsel %vm1196, %v1189, %v1198
    %1202 = vst.msk [vmem:[#allocation3 + $0x274] sm:$0xff] %vm764, %v1197
    %1203 = vst [vmem:[#allocation3 + $0x27c] sm:$0xff] %v1199
    %v1204 = vld [vmem:[#allocation2 + $0x8] sm:$0xff]
    %v1205 = vld [vmem:[#allocation2 + $0x10] sm:$0xff]
    %v1206 = vld [vmem:[#allocation2 + $0x18] sm:$0xf]
    %1210 = vrot.lane.b32.xlu0 %v1204, 106
    %v1211 = vpop.permute.xlu0 %1210
    %1212 = vrot.lane.b32.xlu0 %v1205, 106
    %v1213 = vpop.permute.xlu0 %1212
    %1214 = vrot.lane.b32.xlu0 %v1206, 106
    %v1215 = vpop.permute.xlu0 %1214
    %v1216 = vrot.slane %v1211, 4
    %v1217 = vrot.slane %v1213, 4
    %v1218 = vrot.slane %v1215, 4
    %v1219 = vsel %vm172, %v1216, %v1217
    %vm1220 = vcmask 867328
    %v1221 = vsel %vm1220, %v1211, %v1219
    %v1222 = vsel %vm172, %v1217, %v1218
    %v1223 = vsel %vm1220, %v1213, %v1222
    %1226 = vst.msk [vmem:[#allocation3 + $0x290] sm:$0xff] %vm764, %v1221
    %1227 = vst [vmem:[#allocation3 + $0x298] sm:$0xff] %v1223
    %v1228 = vld [vmem:[#allocation2 + $0x8] sm:$0xff]
    %v1229 = vld [vmem:[#allocation2 + $0x10] sm:$0xff]
    %v1230 = vld [vmem:[#allocation2 + $0x18] sm:$0xf]
    %1234 = vrot.lane.b32.xlu0 %v1228, 100
    %v1235 = vpop.permute.xlu0 %1234
    %1236 = vrot.lane.b32.xlu0 %v1229, 100
    %v1237 = vpop.permute.xlu0 %1236
    %1238 = vrot.lane.b32.xlu0 %v1230, 100
    %v1239 = vpop.permute.xlu0 %1238
    %v1240 = vrot.slane %v1235, 4
    %v1241 = vrot.slane %v1237, 4
    %v1242 = vrot.slane %v1239, 4
    %v1243 = vsel %vm172, %v1240, %v1241
    %vm1244 = vcmask 818176
    %v1245 = vsel %vm1244, %v1235, %v1243
    %v1246 = vsel %vm172, %v1241, %v1242
    %v1247 = vsel %vm1244, %v1237, %v1246
    %1250 = vst.msk [vmem:[#allocation3 + $0x2ac] sm:$0xff] %vm764, %v1245
    %1251 = vst [vmem:[#allocation3 + $0x2b4] sm:$0xff] %v1247
    %v1252 = vld [vmem:[#allocation7] sm:$0xff]
    %v1253 = vld [vmem:[#allocation3] sm:$0xff]
    %v1254 = vld [vmem:[#allocation3 + $0x8] sm:$0xff]
    %v1255 = vld [vmem:[#allocation3 + $0x10] sm:$0xff]
    %v1256 = vld [vmem:[#allocation3 + $0x18] sm:$0xf]
    %v1257 = vld [vmem:[#allocation3 + $0x1c] sm:$0xff]
    %v1258 = vld [vmem:[#allocation3 + $0x24] sm:$0xff]
    %v1259 = vld [vmem:[#allocation3 + $0x2c] sm:$0xff]
    %v1260 = vld [vmem:[#allocation3 + $0x34] sm:$0xf]
    %v1261 = vld [vmem:[#allocation3 + $0x38] sm:$0xff]
    %v1262 = vld [vmem:[#allocation3 + $0x40] sm:$0xff]
    %v1263 = vld [vmem:[#allocation3 + $0x48] sm:$0xff]
    %v1264 = vld [vmem:[#allocation3 + $0x50] sm:$0xf]
    %v1265 = vld [vmem:[#allocation3 + $0x54] sm:$0xff]
    %v1266 = vld [vmem:[#allocation3 + $0x5c] sm:$0xff]
    %v1267 = vld [vmem:[#allocation3 + $0x64] sm:$0xff]
    %v1268 = vld [vmem:[#allocation3 + $0x6c] sm:$0xf]
    %v1269 = vld [vmem:[#allocation3 + $0x70] sm:$0xff]
    %v1270 = vld [vmem:[#allocation3 + $0x78] sm:$0xff]
    %v1271 = vld [vmem:[#allocation3 + $0x80] sm:$0xff]
    %v1272 = vld [vmem:[#allocation3 + $0x88] sm:$0xf]
    %v1273 = vld [vmem:[#allocation3 + $0x8c] sm:$0xff]
    %v1274 = vld [vmem:[#allocation3 + $0x94] sm:$0xff]
    %v1275 = vld [vmem:[#allocation3 + $0x9c] sm:$0xff]
    %v1276 = vld [vmem:[#allocation3 + $0xa4] sm:$0xf]
    %v1277 = vld [vmem:[#allocation3 + $0xa8] sm:$0xff]
    %v1278 = vld [vmem:[#allocation3 + $0xb0] sm:$0xff]
    %v1279 = vld [vmem:[#allocation3 + $0xb8] sm:$0xff]
    %v1280 = vld [vmem:[#allocation3 + $0xc0] sm:$0xf]
    %v1281 = vld [vmem:[#allocation3 + $0xc4] sm:$0xff]
    %v1282 = vld [vmem:[#allocation3 + $0xcc] sm:$0xff]
    %v1283 = vld [vmem:[#allocation3 + $0xd4] sm:$0xff]
    %v1284 = vld [vmem:[#allocation3 + $0xdc] sm:$0xf]
    %v1285 = vld [vmem:[#allocation3 + $0xe0] sm:$0xff]
    %v1286 = vld [vmem:[#allocation3 + $0xe8] sm:$0xff]
    %v1287 = vld [vmem:[#allocation3 + $0xf0] sm:$0xff]
    %v1288 = vld [vmem:[#allocation3 + $0xf8] sm:$0xf]
    %v1289 = vld [vmem:[#allocation3 + $0xfc] sm:$0xff]
    %v1290 = vld [vmem:[#allocation3 + $0x104] sm:$0xff]
    %v1291 = vld [vmem:[#allocation3 + $0x10c] sm:$0xff]
    %v1292 = vld [vmem:[#allocation3 + $0x114] sm:$0xf]
    %v1293 = vld [vmem:[#allocation3 + $0x118] sm:$0xff]
    %v1294 = vld [vmem:[#allocation3 + $0x120] sm:$0xff]
    %v1295 = vld [vmem:[#allocation3 + $0x128] sm:$0xff]
    %v1296 = vld [vmem:[#allocation3 + $0x130] sm:$0xf]
    %v1297 = vld [vmem:[#allocation3 + $0x134] sm:$0xff]
    %v1298 = vld [vmem:[#allocation3 + $0x13c] sm:$0xff]
    %v1299 = vld [vmem:[#allocation3 + $0x144] sm:$0xff]
    %v1300 = vld [vmem:[#allocation3 + $0x14c] sm:$0xf]
    %v1301 = vld [vmem:[#allocation3 + $0x150] sm:$0xff]
    %v1302 = vld [vmem:[#allocation3 + $0x158] sm:$0xff]
    %v1303 = vld [vmem:[#allocation3 + $0x160] sm:$0xff]
    %v1304 = vld [vmem:[#allocation3 + $0x168] sm:$0xf]
    %v1305 = vld [vmem:[#allocation3 + $0x16c] sm:$0xff]
    %v1306 = vld [vmem:[#allocation3 + $0x174] sm:$0xff]
    %v1307 = vld [vmem:[#allocation3 + $0x17c] sm:$0xff]
    %v1308 = vld [vmem:[#allocation3 + $0x184] sm:$0xf]
    %v1309 = vld [vmem:[#allocation3 + $0x188] sm:$0xff]
    %v1310 = vld [vmem:[#allocation3 + $0x190] sm:$0xff]
    %v1311 = vld [vmem:[#allocation3 + $0x198] sm:$0xff]
    %v1312 = vld [vmem:[#allocation3 + $0x1a0] sm:$0xf]
    %v1313 = vld [vmem:[#allocation3 + $0x1a4] sm:$0xff]
    %v1314 = vld [vmem:[#allocation3 + $0x1ac] sm:$0xff]
    %v1315 = vld [vmem:[#allocation3 + $0x1b4] sm:$0xff]
    %v1316 = vld [vmem:[#allocation3 + $0x1bc] sm:$0xf]
    %v1317 = vld [vmem:[#allocation3 + $0x1c0] sm:$0xff]
    %v1318 = vld [vmem:[#allocation3 + $0x1c8] sm:$0xff]
    %v1319 = vld [vmem:[#allocation3 + $0x1d0] sm:$0xff]
    %v1320 = vld [vmem:[#allocation3 + $0x1d8] sm:$0xf]
    %v1321 = vld [vmem:[#allocation3 + $0x1dc] sm:$0xff]
    %v1322 = vld [vmem:[#allocation3 + $0x1e4] sm:$0xff]
    %v1323 = vld [vmem:[#allocation3 + $0x1ec] sm:$0xff]
    %v1324 = vld [vmem:[#allocation3 + $0x1f4] sm:$0xf]
    %v1325 = vld [vmem:[#allocation3 + $0x1f8] sm:$0xff]
    %v1326 = vld [vmem:[#allocation3 + $0x200] sm:$0xff]
    %v1327 = vld [vmem:[#allocation3 + $0x208] sm:$0xff]
    %v1328 = vld [vmem:[#allocation3 + $0x210] sm:$0xf]
    %v1329 = vld [vmem:[#allocation3 + $0x214] sm:$0xff]
    %v1330 = vld [vmem:[#allocation3 + $0x21c] sm:$0xff]
    %v1331 = vld [vmem:[#allocation3 + $0x224] sm:$0xff]
    %v1332 = vld [vmem:[#allocation3 + $0x22c] sm:$0xf]
    %v1333 = vld [vmem:[#allocation3 + $0x230] sm:$0xff]
    %v1334 = vld [vmem:[#allocation3 + $0x238] sm:$0xff]
    %v1335 = vld [vmem:[#allocation3 + $0x240] sm:$0xff]
    %v1336 = vld [vmem:[#allocation3 + $0x248] sm:$0xf]
    %v1337 = vld [vmem:[#allocation3 + $0x24c] sm:$0xff]
    %v1338 = vld [vmem:[#allocation3 + $0x254] sm:$0xff]
    %v1339 = vld [vmem:[#allocation3 + $0x25c] sm:$0xff]
    %v1340 = vld [vmem:[#allocation3 + $0x264] sm:$0xf]
    %v1341 = vld [vmem:[#allocation3 + $0x268] sm:$0xff]
    %v1342 = vld [vmem:[#allocation3 + $0x270] sm:$0xff]
    %v1343 = vld [vmem:[#allocation3 + $0x278] sm:$0xff]
    %v1344 = vld [vmem:[#allocation3 + $0x280] sm:$0xf]
    %v1345 = vld [vmem:[#allocation3 + $0x284] sm:$0xff]
    %v1346 = vld [vmem:[#allocation3 + $0x28c] sm:$0xff]
    %v1347 = vld [vmem:[#allocation3 + $0x294] sm:$0xff]
    %v1348 = vld [vmem:[#allocation3 + $0x29c] sm:$0xf]
    %v1349 = vld [vmem:[#allocation3 + $0x2a0] sm:$0xff]
    %v1350 = vld [vmem:[#allocation3 + $0x2a8] sm:$0xff]
    %v1351 = vld [vmem:[#allocation3 + $0x2b0] sm:$0xff]
    %v1352 = vld [vmem:[#allocation3 + $0x2b8] sm:$0xf]
    %v1354 = vunpack.c.l.b16 %v1252
    %v1355 = vunpack.c.h.b16 %v1252
    %v1356 = vpack.c.b16 %v1354, %v1354
    %v1357 = vpack.c.b16 %v1355, %v1355
    %v1459 = vunpack.c.l.b16 %v1253
    %v1460 = vunpack.c.h.b16 %v1253
    %v1461 = vunpack.c.l.b16 %v1254
    %v1462 = vunpack.c.h.b16 %v1254
    %v1463 = vunpack.c.l.b16 %v1255
    %v1464 = vunpack.c.h.b16 %v1255
    %v1465 = vunpack.c.l.b16 %v1256
    %v1466 = vunpack.c.l.b16 %v1257
    %v1467 = vunpack.c.h.b16 %v1257
    %v1468 = vunpack.c.l.b16 %v1258
    %v1469 = vunpack.c.h.b16 %v1258
    %v1470 = vunpack.c.l.b16 %v1259
    %v1471 = vunpack.c.h.b16 %v1259
    %v1472 = vunpack.c.l.b16 %v1260
    %v1473 = vunpack.c.l.b16 %v1261
    %v1474 = vunpack.c.h.b16 %v1261
    %v1475 = vunpack.c.l.b16 %v1262
    %v1476 = vunpack.c.h.b16 %v1262
    %v1477 = vunpack.c.l.b16 %v1263
    %v1478 = vunpack.c.h.b16 %v1263
    %v1479 = vunpack.c.l.b16 %v1264
    %v1480 = vunpack.c.l.b16 %v1265
    %v1481 = vunpack.c.h.b16 %v1265
    %v1482 = vunpack.c.l.b16 %v1266
    %v1483 = vunpack.c.h.b16 %v1266
    %v1484 = vunpack.c.l.b16 %v1267
    %v1485 = vunpack.c.h.b16 %v1267
    %v1486 = vunpack.c.l.b16 %v1268
    %v1487 = vunpack.c.l.b16 %v1269
    %v1488 = vunpack.c.h.b16 %v1269
    %v1489 = vunpack.c.l.b16 %v1270
    %v1490 = vunpack.c.h.b16 %v1270
    %v1491 = vunpack.c.l.b16 %v1271
    %v1492 = vunpack.c.h.b16 %v1271
    %v1493 = vunpack.c.l.b16 %v1272
    %v1494 = vunpack.c.l.b16 %v1273
    %v1495 = vunpack.c.h.b16 %v1273
    %v1496 = vunpack.c.l.b16 %v1274
    %v1497 = vunpack.c.h.b16 %v1274
    %v1498 = vunpack.c.l.b16 %v1275
    %v1499 = vunpack.c.h.b16 %v1275
    %v1500 = vunpack.c.l.b16 %v1276
    %v1501 = vunpack.c.l.b16 %v1277
    %v1502 = vunpack.c.h.b16 %v1277
    %v1503 = vunpack.c.l.b16 %v1278
    %v1504 = vunpack.c.h.b16 %v1278
    %v1505 = vunpack.c.l.b16 %v1279
    %v1506 = vunpack.c.h.b16 %v1279
    %v1507 = vunpack.c.l.b16 %v1280
    %v1508 = vunpack.c.l.b16 %v1281
    %v1509 = vunpack.c.h.b16 %v1281
    %v1510 = vunpack.c.l.b16 %v1282
    %v1511 = vunpack.c.h.b16 %v1282
    %v1512 = vunpack.c.l.b16 %v1283
    %v1513 = vunpack.c.h.b16 %v1283
    %v1514 = vunpack.c.l.b16 %v1284
    %v1515 = vunpack.c.l.b16 %v1285
    %v1516 = vunpack.c.h.b16 %v1285
    %v1517 = vunpack.c.l.b16 %v1286
    %v1518 = vunpack.c.h.b16 %v1286
    %v1519 = vunpack.c.l.b16 %v1287
    %v1520 = vunpack.c.h.b16 %v1287
    %v1521 = vunpack.c.l.b16 %v1288
    %v1522 = vunpack.c.l.b16 %v1289
    %v1523 = vunpack.c.h.b16 %v1289
    %v1524 = vunpack.c.l.b16 %v1290
    %v1525 = vunpack.c.h.b16 %v1290
    %v1526 = vunpack.c.l.b16 %v1291
    %v1527 = vunpack.c.h.b16 %v1291
    %v1528 = vunpack.c.l.b16 %v1292
    %v1529 = vunpack.c.l.b16 %v1293
    %v1530 = vunpack.c.h.b16 %v1293
    %v1531 = vunpack.c.l.b16 %v1294
    %v1532 = vunpack.c.h.b16 %v1294
    %v1533 = vunpack.c.l.b16 %v1295
    %v1534 = vunpack.c.h.b16 %v1295
    %v1535 = vunpack.c.l.b16 %v1296
    %v1536 = vunpack.c.l.b16 %v1297
    %v1537 = vunpack.c.h.b16 %v1297
    %v1538 = vunpack.c.l.b16 %v1298
    %v1539 = vunpack.c.h.b16 %v1298
    %v1540 = vunpack.c.l.b16 %v1299
    %v1541 = vunpack.c.h.b16 %v1299
    %v1542 = vunpack.c.l.b16 %v1300
    %v1543 = vunpack.c.l.b16 %v1301
    %v1544 = vunpack.c.h.b16 %v1301
    %v1545 = vunpack.c.l.b16 %v1302
    %v1546 = vunpack.c.h.b16 %v1302
    %v1547 = vunpack.c.l.b16 %v1303
    %v1548 = vunpack.c.h.b16 %v1303
    %v1549 = vunpack.c.l.b16 %v1304
    %v1550 = vunpack.c.l.b16 %v1305
    %v1551 = vunpack.c.h.b16 %v1305
    %v1552 = vunpack.c.l.b16 %v1306
    %v1553 = vunpack.c.h.b16 %v1306
    %v1554 = vunpack.c.l.b16 %v1307
    %v1555 = vunpack.c.h.b16 %v1307
    %v1556 = vunpack.c.l.b16 %v1308
    %v1557 = vunpack.c.l.b16 %v1309
    %v1558 = vunpack.c.h.b16 %v1309
    %v1559 = vunpack.c.l.b16 %v1310
    %v1560 = vunpack.c.h.b16 %v1310
    %v1561 = vunpack.c.l.b16 %v1311
    %v1562 = vunpack.c.h.b16 %v1311
    %v1563 = vunpack.c.l.b16 %v1312
    %v1564 = vunpack.c.l.b16 %v1313
    %v1565 = vunpack.c.h.b16 %v1313
    %v1566 = vunpack.c.l.b16 %v1314
    %v1567 = vunpack.c.h.b16 %v1314
    %v1568 = vunpack.c.l.b16 %v1315
    %v1569 = vunpack.c.h.b16 %v1315
    %v1570 = vunpack.c.l.b16 %v1316
    %v1571 = vunpack.c.l.b16 %v1317
    %v1572 = vunpack.c.h.b16 %v1317
    %v1573 = vunpack.c.l.b16 %v1318
    %v1574 = vunpack.c.h.b16 %v1318
    %v1575 = vunpack.c.l.b16 %v1319
    %v1576 = vunpack.c.h.b16 %v1319
    %v1577 = vunpack.c.l.b16 %v1320
    %v1578 = vunpack.c.l.b16 %v1321
    %v1579 = vunpack.c.h.b16 %v1321
    %v1580 = vunpack.c.l.b16 %v1322
    %v1581 = vunpack.c.h.b16 %v1322
    %v1582 = vunpack.c.l.b16 %v1323
    %v1583 = vunpack.c.h.b16 %v1323
    %v1584 = vunpack.c.l.b16 %v1324
    %v1585 = vunpack.c.l.b16 %v1325
    %v1586 = vunpack.c.h.b16 %v1325
    %v1587 = vunpack.c.l.b16 %v1326
    %v1588 = vunpack.c.h.b16 %v1326
    %v1589 = vunpack.c.l.b16 %v1327
    %v1590 = vunpack.c.h.b16 %v1327
    %v1591 = vunpack.c.l.b16 %v1328
    %v1592 = vunpack.c.l.b16 %v1329
    %v1593 = vunpack.c.h.b16 %v1329
    %v1594 = vunpack.c.l.b16 %v1330
    %v1595 = vunpack.c.h.b16 %v1330
    %v1596 = vunpack.c.l.b16 %v1331
    %v1597 = vunpack.c.h.b16 %v1331
    %v1598 = vunpack.c.l.b16 %v1332
    %v1599 = vunpack.c.l.b16 %v1333
    %v1600 = vunpack.c.h.b16 %v1333
    %v1601 = vunpack.c.l.b16 %v1334
    %v1602 = vunpack.c.h.b16 %v1334
    %v1603 = vunpack.c.l.b16 %v1335
    %v1604 = vunpack.c.h.b16 %v1335
    %v1605 = vunpack.c.l.b16 %v1336
    %v1606 = vunpack.c.l.b16 %v1337
    %v1607 = vunpack.c.h.b16 %v1337
    %v1608 = vunpack.c.l.b16 %v1338
    %v1609 = vunpack.c.h.b16 %v1338
    %v1610 = vunpack.c.l.b16 %v1339
    %v1611 = vunpack.c.h.b16 %v1339
    %v1612 = vunpack.c.l.b16 %v1340
    %v1613 = vunpack.c.l.b16 %v1341
    %v1614 = vunpack.c.h.b16 %v1341
    %v1615 = vunpack.c.l.b16 %v1342
    %v1616 = vunpack.c.h.b16 %v1342
    %v1617 = vunpack.c.l.b16 %v1343
    %v1618 = vunpack.c.h.b16 %v1343
    %v1619 = vunpack.c.l.b16 %v1344
    %v1620 = vunpack.c.l.b16 %v1345
    %v1621 = vunpack.c.h.b16 %v1345
    %v1622 = vunpack.c.l.b16 %v1346
    %v1623 = vunpack.c.h.b16 %v1346
    %v1624 = vunpack.c.l.b16 %v1347
    %v1625 = vunpack.c.h.b16 %v1347
    %v1626 = vunpack.c.l.b16 %v1348
    %v1627 = vunpack.c.l.b16 %v1349
    %v1628 = vunpack.c.h.b16 %v1349
    %v1629 = vunpack.c.l.b16 %v1350
    %v1630 = vunpack.c.h.b16 %v1350
    %v1631 = vunpack.c.l.b16 %v1351
    %v1632 = vunpack.c.h.b16 %v1351
    %v1633 = vunpack.c.l.b16 %v1352
    %v1634 = vpack.c.b16 %v1466, %v1459
    %v1635 = vpack.c.b16 %v1467, %v1460
    %v1636 = vpack.c.b16 %v1468, %v1461
    %v1637 = vpack.c.b16 %v1469, %v1462
    %v1638 = vpack.c.b16 %v1470, %v1463
    %v1639 = vpack.c.b16 %v1471, %v1464
    %v1640 = vpack.c.b16 %v1472, %v1465
    %v1641 = vpack.c.b16 %v1480, %v1473
    %v1642 = vpack.c.b16 %v1481, %v1474
    %v1643 = vpack.c.b16 %v1482, %v1475
    %v1644 = vpack.c.b16 %v1483, %v1476
    %v1645 = vpack.c.b16 %v1484, %v1477
    %v1646 = vpack.c.b16 %v1485, %v1478
    %v1647 = vpack.c.b16 %v1486, %v1479
    %v1648 = vpack.c.b16 %v1494, %v1487
    %v1649 = vpack.c.b16 %v1495, %v1488
    %v1650 = vpack.c.b16 %v1496, %v1489
    %v1651 = vpack.c.b16 %v1497, %v1490
    %v1652 = vpack.c.b16 %v1498, %v1491
    %v1653 = vpack.c.b16 %v1499, %v1492
    %v1654 = vpack.c.b16 %v1500, %v1493
    %v1655 = vpack.c.b16 %v1508, %v1501
    %v1656 = vpack.c.b16 %v1509, %v1502
    %v1657 = vpack.c.b16 %v1510, %v1503
    %v1658 = vpack.c.b16 %v1511, %v1504
    %v1659 = vpack.c.b16 %v1512, %v1505
    %v1660 = vpack.c.b16 %v1513, %v1506
    %v1661 = vpack.c.b16 %v1514, %v1507
    %v1662 = vpack.c.b16 %v1522, %v1515
    %v1663 = vpack.c.b16 %v1523, %v1516
    %v1664 = vpack.c.b16 %v1524, %v1517
    %v1665 = vpack.c.b16 %v1525, %v1518
    %v1666 = vpack.c.b16 %v1526, %v1519
    %v1667 = vpack.c.b16 %v1527, %v1520
    %v1668 = vpack.c.b16 %v1528, %v1521
    %v1669 = vpack.c.b16 %v1536, %v1529
    %v1670 = vpack.c.b16 %v1537, %v1530
    %v1671 = vpack.c.b16 %v1538, %v1531
    %v1672 = vpack.c.b16 %v1539, %v1532
    %v1673 = vpack.c.b16 %v1540, %v1533
    %v1674 = vpack.c.b16 %v1541, %v1534
    %v1675 = vpack.c.b16 %v1542, %v1535
    %v1676 = vpack.c.b16 %v1550, %v1543
    %v1677 = vpack.c.b16 %v1551, %v1544
    %v1678 = vpack.c.b16 %v1552, %v1545
    %v1679 = vpack.c.b16 %v1553, %v1546
    %v1680 = vpack.c.b16 %v1554, %v1547
    %v1681 = vpack.c.b16 %v1555, %v1548
    %v1682 = vpack.c.b16 %v1556, %v1549
    %v1683 = vpack.c.b16 %v1564, %v1557
    %v1684 = vpack.c.b16 %v1565, %v1558
    %v1685 = vpack.c.b16 %v1566, %v1559
    %v1686 = vpack.c.b16 %v1567, %v1560
    %v1687 = vpack.c.b16 %v1568, %v1561
    %v1688 = vpack.c.b16 %v1569, %v1562
    %v1689 = vpack.c.b16 %v1570, %v1563
    %v1690 = vpack.c.b16 %v1578, %v1571
    %v1691 = vpack.c.b16 %v1579, %v1572
    %v1692 = vpack.c.b16 %v1580, %v1573
    %v1693 = vpack.c.b16 %v1581, %v1574
    %v1694 = vpack.c.b16 %v1582, %v1575
    %v1695 = vpack.c.b16 %v1583, %v1576
    %v1696 = vpack.c.b16 %v1584, %v1577
    %v1697 = vpack.c.b16 %v1592, %v1585
    %v1698 = vpack.c.b16 %v1593, %v1586
    %v1699 = vpack.c.b16 %v1594, %v1587
    %v1700 = vpack.c.b16 %v1595, %v1588
    %v1701 = vpack.c.b16 %v1596, %v1589
    %v1702 = vpack.c.b16 %v1597, %v1590
    %v1703 = vpack.c.b16 %v1598, %v1591
    %v1704 = vpack.c.b16 %v1606, %v1599
    %v1705 = vpack.c.b16 %v1607, %v1600
    %v1706 = vpack.c.b16 %v1608, %v1601
    %v1707 = vpack.c.b16 %v1609, %v1602
    %v1708 = vpack.c.b16 %v1610, %v1603
    %v1709 = vpack.c.b16 %v1611, %v1604
    %v1710 = vpack.c.b16 %v1612, %v1605
    %v1711 = vpack.c.b16 %v1620, %v1613
    %v1712 = vpack.c.b16 %v1621, %v1614
    %v1713 = vpack.c.b16 %v1622, %v1615
    %v1714 = vpack.c.b16 %v1623, %v1616
    %v1715 = vpack.c.b16 %v1624, %v1617
    %v1716 = vpack.c.b16 %v1625, %v1618
    %v1717 = vpack.c.b16 %v1626, %v1619
    %v1718 = vpack.c.b16 %v1627, %v1627
    %v1719 = vpack.c.b16 %v1628, %v1628
    %v1720 = vpack.c.b16 %v1629, %v1629
    %v1721 = vpack.c.b16 %v1630, %v1630
    %v1722 = vpack.c.b16 %v1631, %v1631
    %v1723 = vpack.c.b16 %v1632, %v1632
    %v1724 = vpack.c.b16 %v1633, %v1633
    %vm1809 = vcmask 588800
    %v1811 = vsel %vm1809, %v1357, 0
    %v1814 = vsel %vm181, %v1718, 0
    %v1817 = vsel %vm181, %v1719, 0
    %v1820 = vsel %vm181, %v1720, 0
    %v1823 = vsel %vm181, %v1721, 0
    %v1826 = vsel %vm181, %v1722, 0
    %v1829 = vsel %vm181, %v1723, 0
    %v1832 = vsel %vm181, %v1724, 0
    %1834 = vmatpush.bf16.msra.mxu0 %v1683
    %1835 = vmatpush.bf16.msra.mxu0 %v1676
    %1836 = vmatpush.bf16.msra.mxu0 %v1669
    %1837 = vmatpush.bf16.msra.mxu0 %v1662
    %1838 = vmatpush.bf16.msra.mxu0 %v1655
    %1839 = vmatpush.bf16.msra.mxu0 %v1648
    %1840 = vmatpush.bf16.msra.mxu0 %v1641
    %1841 = vmatpush.bf16.msra.mxu0 %v1634
    %1842 = vmatmul.bf16.gmra.mxu0 %v1356
    %v1843 = vpop.f32.mrf.mxu0
    %v1844 = vadd.f32 0.0, %v1843
    %v1845 = vpop.f32.mrf.mxu0
    %1846 = vdwg.mxu0
    %1847 = vmatpush.bf16.msra.mxu0 0
    %1848 = vmatpush.bf16.msra.mxu0 0
    %1849 = vmatpush.bf16.msra.mxu0 0
    %1850 = vmatpush.bf16.msra.mxu0 %v1814
    %1851 = vmatpush.bf16.msra.mxu0 %v1711
    %1852 = vmatpush.bf16.msra.mxu0 %v1704
    %1853 = vmatpush.bf16.msra.mxu0 %v1697
    %1854 = vmatpush.bf16.msra.mxu0 %v1690
    %1855 = vmatmul.bf16.gmra.mxu0 %v1811
    %v1856 = vpop.f32.mrf.mxu0
    %v1857 = vadd.f32 %v1844, %v1856
    %v1858 = vpop.f32.mrf.mxu0
    %1859 = vdwg.mxu0
    %1860 = vmatpush.bf16.msra.mxu0 %v1684
    %1861 = vmatpush.bf16.msra.mxu0 %v1677
    %1862 = vmatpush.bf16.msra.mxu0 %v1670
    %1863 = vmatpush.bf16.msra.mxu0 %v1663
    %1864 = vmatpush.bf16.msra.mxu0 %v1656
    %1865 = vmatpush.bf16.msra.mxu0 %v1649
    %1866 = vmatpush.bf16.msra.mxu0 %v1642
    %1867 = vmatpush.bf16.msra.mxu0 %v1635
    %1868 = vmatmul.bf16.gmra.mxu0 %v1356
    %v1869 = vpop.f32.mrf.mxu0
    %v1870 = vadd.f32 0.0, %v1869
    %v1871 = vpop.f32.mrf.mxu0
    %1872 = vdwg.mxu0
    %1873 = vmatpush.bf16.msra.mxu0 0
    %1874 = vmatpush.bf16.msra.mxu0 0
    %1875 = vmatpush.bf16.msra.mxu0 0
    %1876 = vmatpush.bf16.msra.mxu0 %v1817
    %1877 = vmatpush.bf16.msra.mxu0 %v1712
    %1878 = vmatpush.bf16.msra.mxu0 %v1705
    %1879 = vmatpush.bf16.msra.mxu0 %v1698
    %1880 = vmatpush.bf16.msra.mxu0 %v1691
    %1881 = vmatmul.bf16.gmra.mxu0 %v1811
    %v1882 = vpop.f32.mrf.mxu0
    %v1883 = vadd.f32 %v1870, %v1882
    %v1884 = vpop.f32.mrf.mxu0
    %1885 = vdwg.mxu0
    %1886 = vmatpush.bf16.msra.mxu0 %v1685
    %1887 = vmatpush.bf16.msra.mxu0 %v1678
    %1888 = vmatpush.bf16.msra.mxu0 %v1671
    %1889 = vmatpush.bf16.msra.mxu0 %v1664
    %1890 = vmatpush.bf16.msra.mxu0 %v1657
    %1891 = vmatpush.bf16.msra.mxu0 %v1650
    %1892 = vmatpush.bf16.msra.mxu0 %v1643
    %1893 = vmatpush.bf16.msra.mxu0 %v1636
    %1894 = vmatmul.bf16.gmra.mxu0 %v1356
    %v1895 = vpop.f32.mrf.mxu0
    %v1896 = vadd.f32 0.0, %v1895
    %v1897 = vpop.f32.mrf.mxu0
    %1898 = vdwg.mxu0
    %1899 = vmatpush.bf16.msra.mxu0 0
    %1900 = vmatpush.bf16.msra.mxu0 0
    %1901 = vmatpush.bf16.msra.mxu0 0
    %1902 = vmatpush.bf16.msra.mxu0 %v1820
    %1903 = vmatpush.bf16.msra.mxu0 %v1713
    %1904 = vmatpush.bf16.msra.mxu0 %v1706
    %1905 = vmatpush.bf16.msra.mxu0 %v1699
    %1906 = vmatpush.bf16.msra.mxu0 %v1692
    %1907 = vmatmul.bf16.gmra.mxu0 %v1811
    %v1908 = vpop.f32.mrf.mxu0
    %v1909 = vadd.f32 %v1896, %v1908
    %v1910 = vpop.f32.mrf.mxu0
    %1911 = vdwg.mxu0
    %1912 = vmatpush.bf16.msra.mxu0 %v1686
    %1913 = vmatpush.bf16.msra.mxu0 %v1679
    %1914 = vmatpush.bf16.msra.mxu0 %v1672
    %1915 = vmatpush.bf16.msra.mxu0 %v1665
    %1916 = vmatpush.bf16.msra.mxu0 %v1658
    %1917 = vmatpush.bf16.msra.mxu0 %v1651
    %1918 = vmatpush.bf16.msra.mxu0 %v1644
    %1919 = vmatpush.bf16.msra.mxu0 %v1637
    %1920 = vmatmul.bf16.gmra.mxu0 %v1356
    %v1921 = vpop.f32.mrf.mxu0
    %v1922 = vadd.f32 0.0, %v1921
    %v1923 = vpop.f32.mrf.mxu0
    %1924 = vdwg.mxu0
    %1925 = vmatpush.bf16.msra.mxu0 0
    %1926 = vmatpush.bf16.msra.mxu0 0
    %1927 = vmatpush.bf16.msra.mxu0 0
    %1928 = vmatpush.bf16.msra.mxu0 %v1823
    %1929 = vmatpush.bf16.msra.mxu0 %v1714
    %1930 = vmatpush.bf16.msra.mxu0 %v1707
    %1931 = vmatpush.bf16.msra.mxu0 %v1700
    %1932 = vmatpush.bf16.msra.mxu0 %v1693
    %1933 = vmatmul.bf16.gmra.mxu0 %v1811
    %v1934 = vpop.f32.mrf.mxu0
    %v1935 = vadd.f32 %v1922, %v1934
    %v1936 = vpop.f32.mrf.mxu0
    %1937 = vdwg.mxu0
    %1938 = vmatpush.bf16.msra.mxu0 %v1687
    %1939 = vmatpush.bf16.msra.mxu0 %v1680
    %1940 = vmatpush.bf16.msra.mxu0 %v1673
    %1941 = vmatpush.bf16.msra.mxu0 %v1666
    %1942 = vmatpush.bf16.msra.mxu0 %v1659
    %1943 = vmatpush.bf16.msra.mxu0 %v1652
    %1944 = vmatpush.bf16.msra.mxu0 %v1645
    %1945 = vmatpush.bf16.msra.mxu0 %v1638
    %1946 = vmatmul.bf16.gmra.mxu0 %v1356
    %v1947 = vpop.f32.mrf.mxu0
    %v1948 = vadd.f32 0.0, %v1947
    %v1949 = vpop.f32.mrf.mxu0
    %1950 = vdwg.mxu0
    %1951 = vmatpush.bf16.msra.mxu0 0
    %1952 = vmatpush.bf16.msra.mxu0 0
    %1953 = vmatpush.bf16.msra.mxu0 0
    %1954 = vmatpush.bf16.msra.mxu0 %v1826
    %1955 = vmatpush.bf16.msra.mxu0 %v1715
    %1956 = vmatpush.bf16.msra.mxu0 %v1708
    %1957 = vmatpush.bf16.msra.mxu0 %v1701
    %1958 = vmatpush.bf16.msra.mxu0 %v1694
    %1959 = vmatmul.bf16.gmra.mxu0 %v1811
    %v1960 = vpop.f32.mrf.mxu0
    %v1961 = vadd.f32 %v1948, %v1960
    %v1962 = vpop.f32.mrf.mxu0
    %1963 = vdwg.mxu0
    %1964 = vmatpush.bf16.msra.mxu0 %v1688
    %1965 = vmatpush.bf16.msra.mxu0 %v1681
    %1966 = vmatpush.bf16.msra.mxu0 %v1674
    %1967 = vmatpush.bf16.msra.mxu0 %v1667
    %1968 = vmatpush.bf16.msra.mxu0 %v1660
    %1969 = vmatpush.bf16.msra.mxu0 %v1653
    %1970 = vmatpush.bf16.msra.mxu0 %v1646
    %1971 = vmatpush.bf16.msra.mxu0 %v1639
    %1972 = vmatmul.bf16.gmra.mxu0 %v1356
    %v1973 = vpop.f32.mrf.mxu0
    %v1974 = vadd.f32 0.0, %v1973
    %v1975 = vpop.f32.mrf.mxu0
    %1976 = vdwg.mxu0
    %1977 = vmatpush.bf16.msra.mxu0 0
    %1978 = vmatpush.bf16.msra.mxu0 0
    %1979 = vmatpush.bf16.msra.mxu0 0
    %1980 = vmatpush.bf16.msra.mxu0 %v1829
    %1981 = vmatpush.bf16.msra.mxu0 %v1716
    %1982 = vmatpush.bf16.msra.mxu0 %v1709
    %1983 = vmatpush.bf16.msra.mxu0 %v1702
    %1984 = vmatpush.bf16.msra.mxu0 %v1695
    %1985 = vmatmul.bf16.gmra.mxu0 %v1811
    %v1986 = vpop.f32.mrf.mxu0
    %v1987 = vadd.f32 %v1974, %v1986
    %v1988 = vpop.f32.mrf.mxu0
    %1989 = vdwg.mxu0
    %1990 = vmatpush.bf16.msra.mxu0 %v1689
    %1991 = vmatpush.bf16.msra.mxu0 %v1682
    %1992 = vmatpush.bf16.msra.mxu0 %v1675
    %1993 = vmatpush.bf16.msra.mxu0 %v1668
    %1994 = vmatpush.bf16.msra.mxu0 %v1661
    %1995 = vmatpush.bf16.msra.mxu0 %v1654
    %1996 = vmatpush.bf16.msra.mxu0 %v1647
    %1997 = vmatpush.bf16.msra.mxu0 %v1640
    %1998 = vmatmul.bf16.gmra.mxu0 %v1356
    %v1999 = vpop.f32.mrf.mxu0
    %v2000 = vadd.f32 0.0, %v1999
    %v2001 = vpop.f32.mrf.mxu0
    %2002 = vdwg.mxu0
    %2003 = vmatpush.bf16.msra.mxu0 0
    %2004 = vmatpush.bf16.msra.mxu0 0
    %2005 = vmatpush.bf16.msra.mxu0 0
    %2006 = vmatpush.bf16.msra.mxu0 %v1832
    %2007 = vmatpush.bf16.msra.mxu0 %v1717
    %2008 = vmatpush.bf16.msra.mxu0 %v1710
    %2009 = vmatpush.bf16.msra.mxu0 %v1703
    %2010 = vmatpush.bf16.msra.mxu0 %v1696
    %2011 = vmatmul.bf16.gmra.mxu0 %v1811
    %v2012 = vpop.f32.mrf.mxu0
    %v2013 = vadd.f32 %v2000, %v2012
    %v2014 = vpop.f32.mrf.mxu0
    %2015 = vdwg.mxu0
    %2016 = vst [vmem:[#allocation9] sm:$0xff] %v1857
    %2017 = vst [vmem:[#allocation9 + $0x8] sm:$0xff] %v1883
    %2018 = vst [vmem:[#allocation9 + $0x10] sm:$0xff] %v1909
    %vm2019 = vcmask 523264
    %2020 = vst.msk [vmem:[#allocation9 + $0x18] sm:$0xff] %vm2019, %v1935
    %2025 = vrot.lane.b32.xlu0 %v1935, 64
    %v2026 = vpop.permute.xlu0 %2025
    %2027 = vrot.lane.b32.xlu0 %v1961, 64
    %v2028 = vpop.permute.xlu0 %2027
    %2029 = vrot.lane.b32.xlu0 %v1987, 64
    %v2030 = vpop.permute.xlu0 %2029
    %2031 = vrot.lane.b32.xlu0 %v2013, 64
    %v2032 = vpop.permute.xlu0 %2031
    %v2033 = vsel %vm2019, %v2026, %v2028
    %v2034 = vsel %vm2019, %v2028, %v2030
    %v2035 = vsel %vm2019, %v2030, %v2032
    %s2040 = scalar_lea.vmem [#allocation9], 32
    %2041 = vst [vmem:[%s2040] sm:$0xff] %v2033
    %2042 = vst [vmem:[%s2040 + $0x8] sm:$0xff] %v2034
    %2043 = vst [vmem:[%s2040 + $0x10] sm:$0xff] %v2035
    %2044 = vst.msk [vmem:[%s2040 + $0x18] sm:$0xff] %vm2019, %v2032
    // Predicated region
    $region18: #{tpu_custom_call.1} parent=1 // pred_check
      _
    $region19: #{tpu_custom_call.1} parent=1 // pred_check_branch
      %2046 = sbr.rel (0) target = $region21
    $region20: #{tpu_custom_call.1} parent=1 // pred_region
      %2048 = vsyncadd [#allocation6], 0
      %s2049 = sshll.u32 [#allocation9], 4
      %s2050 = int_to_ptr.vmem [resolvable:$true] %s2049
      %s2051 = sshll.u32 %s2, 4
      %s2052 = int_to_ptr.hbm [resolvable:$true] %s2051
      %2057 = dma.vmem_to_hbm [thread:$0]  %s2050, 1024, %s2052, [#allocation6], 512, 512, 32
    $region21: #{tpu_custom_call.1} parent=1 // pred_fallthru
      _
    // Predicated region
    $region22: #{tpu_custom_call.1} parent=1 // pred_check
      _
    $region23: #{tpu_custom_call.1} parent=1 // pred_check_branch
      %2059 = sbr.rel (0) target = $region25
    $region24: #{tpu_custom_call.1} parent=1 // pred_region
      %2061 = dma.done [#allocation6], 1024
    $region25: #{tpu_custom_call.1} parent=1 // pred_fallthru
      _
    %2062 = vsyncpa [#allocation5], 1
    %2063 = vsyncpa [#allocation8], 1
    %2064 = vsyncpa [#allocation6], 1

</llo_original>
